<compile_context>
chip_gen: v7x
topology: tpu7x:2x2x1
jax: 0.10.0
libtpu: 0.0.40
codegen_flags: <defaults>
</compile_context>

<pallas_src>
import functools

import numpy as np

import jax
import jax.numpy as jnp
from jax import lax
from jax.experimental import pallas as pl
from jax.experimental.pallas import tpu as pltpu


# --------------------------------------------------------------------------- #
# Wrapper-side weight preparation (runs once in XLA, tiny tensors).
# --------------------------------------------------------------------------- #
def _toeplitz_weight(w_hwio, scale, w_in, w_out, *, stride, padding, dilation, groups):
    """Expand a grouped 3x3 HWIO conv weight (with the BN scale folded into the output
    channels) into 3 per-row-tap Toeplitz matrices of shape (3, w_in*Cin, w_out*Cout),
    so a whole lane-flattened image row is convolved with one matmul per row tap.
    W-direction zero padding is baked in (out-of-range taps contribute no rows)."""
    # TODO(synk): add a W-tiled / band-blocked path for large W*Cin*W*Cout (the dense
    # Toeplitz weight is O((W*Cin)*(W*Cout)) and does not scale to production shapes).
    _, _, cig, cout = w_hwio.shape
    cin = cig * groups
    cog = cout // groups
    w = w_hwio.astype(jnp.float32) * scale.astype(jnp.float32)[None, None, None, :]

    # Group-expand to a dense block-diagonal (3, 3, cin, cout) weight.
    wfull = jnp.zeros((3, 3, cin, cout), jnp.float32)
    for g in range(groups):
        wfull = wfull.at[:, :, g * cig:(g + 1) * cig, g * cog:(g + 1) * cog].set(
            w[:, :, :, g * cog:(g + 1) * cog])

    # S[kw, wi, wo] = 1 iff input column wi feeds output column wo through tap kw.
    S = np.zeros((3, w_in, w_out), np.float32)
    wo = np.arange(w_out)
    for kw in range(3):
        wi = wo * stride + kw * dilation - padding
        ok = (wi >= 0) & (wi < w_in)
        S[kw, wi[ok], wo[ok]] = 1.0

    wt = jnp.einsum("kxy,hkcd->hxcyd", jnp.asarray(S), wfull)
    return wt.reshape(3, w_in * cin, w_out * cout)


def _k2_combined_weight(w_hwio, scale, W, r, cin, cout, *, padding, dilation, groups):
    """k2-branch weight with the W-direction average pool folded in on the left and the
    W-direction nearest-neighbour upsample folded in on the right, so the kernel only
    performs the (cheap) H-direction pool / upsample."""
    w2 = W // r
    t2 = _toeplitz_weight(w_hwio, scale, w2, w2, stride=1, padding=padding,
                          dilation=dilation, groups=groups)          # (3, w2*cin, w2*cout)

    pool = np.zeros((W, w2), np.float32)
    pool[np.arange(W), np.arange(W) // r] = 1.0 / r                   # W-direction mean
    P = jnp.asarray(np.kron(pool, np.eye(cin, dtype=np.float32)))     # (W*cin, w2*cin)

    up = np.zeros((w2, W), np.float32)
    up[np.arange(W) // r, np.arange(W)] = 1.0                         # nearest upsample
    E = jnp.asarray(np.kron(up, np.eye(cout, dtype=np.float32)))      # (w2*cout, W*cout)

    return jnp.einsum("ij,hjk,kl->hil", P, t2, E)                     # (3, W*cin, W*cout)


# --------------------------------------------------------------------------- #
# Fused SCConv kernel: B images (stacked along rows) per grid step.
# --------------------------------------------------------------------------- #
def _scconv_kernel(x_ref, wt2_ref, sh2_ref, wt3_ref, sh3_ref, wt4_ref, sh4_ref,
                   pool_ref, ups_ref, o_ref, *, H, h2, stride, dilation):
    x_bf = x_ref[...]                              # (B*H, W*C) bf16, image-major rows
    x_f = x_bf.astype(jnp.float32)

    def conv3(z_bf, period, s, wt_ref, sh_ref):
        """3x3 conv of B lane-flattened images stacked along rows (`period` rows per
        image).  H zero-padding = shift (sublane concat with a d-row zero block) +
        per-image boundary mask; W padding / groups / BN scale live in wt_ref.
        One MXU dot per row tap over ALL B images; f32 accumulation."""
        n_rows, wc = z_bf.shape
        d = dilation
        local = lax.broadcasted_iota(jnp.int32, (n_rows, wc), 0) % period
        zpad = jnp.zeros((d, wc), z_bf.dtype)
        acc = None
        for kh in range(3):
            a = (kh - 1) * d                       # image-local input-row offset
            if a < 0:
                shifted = jnp.concatenate([zpad, z_bf[:n_rows - d, :]], axis=0)
                lhs = jnp.where(local >= d, shifted, jnp.zeros_like(shifted))
            elif a > 0:
                shifted = jnp.concatenate([z_bf[d:, :], zpad], axis=0)
                lhs = jnp.where(local < period - d, shifted, jnp.zeros_like(shifted))
            else:
                lhs = z_bf
            if s > 1:                              # H-direction stride (k4 only)
                lhs = lhs[::s, :]
            t = jnp.dot(lhs, wt_ref[kh], preferred_element_type=jnp.float32)
            acc = t if acc is None else acc + t
        return acc + sh_ref[...]                   # folded BN shift, (1, n_out) bcast

    # ---- k2 branch: avgpool_r -> conv3x3 -> BN -> nearest upsample ----
    # H-direction pool / upsample are exact 0/1 matmuls (tiny); W-direction pool /
    # upsample are folded into wt2.
    pooled = jnp.dot(pool_ref[...], x_f, preferred_element_type=jnp.float32)   # (B*h2, W*C)
    y2 = conv3(pooled.astype(jnp.bfloat16), h2, 1, wt2_ref, sh2_ref)           # (B*h2, W*Co)
    up = jnp.dot(ups_ref[...], y2, preferred_element_type=jnp.float32)         # (B*H, W*Co)

    # ---- k3 branch + gate (all f32 elementwise, one sigmoid / one mul) ----
    y3 = conv3(x_bf, H, 1, wt3_ref, sh3_ref)                                   # (B*H, W*Co)
    mid = y3 * jax.nn.sigmoid(x_f + up)

    # ---- k4 branch: conv3x3(stride) -> BN ----
    y4 = conv3(mid.astype(jnp.bfloat16), H, stride, wt4_ref, sh4_ref)
    o_ref[...] = y4.astype(o_ref.dtype)            # single lane-dense aligned store


# --------------------------------------------------------------------------- #
# Public wrapper (NCHW in / NCHW out, PyTorch-style parameters).
# --------------------------------------------------------------------------- #
def scconv_forward(x_nchw, params, *, stride, padding, dilation, groups, pooling_r,
                   eps=1e-5, batch_block=None):
    N, C, H, W = x_nchw.shape
    r = pooling_r
    # TODO(synk): general F.interpolate('nearest') for H/W not divisible by pooling_r
    # or padding != dilation; the fused pool/upsample assumes the SCNet configuration.
    assert H % r == 0 and W % r == 0, "pooling_r must divide H and W"
    assert padding == dilation, "kernel assumes padding == dilation (SCNet default)"
    assert stride == 1 or H % stride == 0, "kernel assumes stride divides H"

    if batch_block is None:                       # largest divisor of N up to 8
        batch_block = max(b for b in range(1, min(N, 8) + 1) if N % b == 0)
    B = batch_block
    assert N % B == 0
    assert (B * H) % 8 == 0, "B*H must be a multiple of 8 for the (8,128) tiling"

    def bn_fold(gamma, beta, mean, var):
        inv = 1.0 / jnp.sqrt(var + eps)
        return gamma * inv, beta - mean * gamma * inv

    w2_, g2, b2, m2, v2 = params["k2"]
    w3_, g3, b3, m3, v3 = params["k3"]
    w4_, g4, b4, m4, v4 = params["k4"]
    Cout = w3_.shape[-1]
    assert Cout == C, "SCConv gating requires planes == inplanes"

    sc2, shift2 = bn_fold(g2, b2, m2, v2)
    sc3, shift3 = bn_fold(g3, b3, m3, v3)
    sc4, shift4 = bn_fold(g4, b4, m4, v4)

    h2 = H // r
    out_h4 = (H + 2 * padding - dilation * 2 - 1) // stride + 1
    out_w4 = (W + 2 * padding - dilation * 2 - 1) // stride + 1
    WC, WCo = W * C, W * Cout

    # Toeplitz-expanded, BN-scale-folded, bf16 weights (built once, reused per step).
    wt2 = _k2_combined_weight(w2_, sc2, W, r, C, Cout, padding=padding,
                              dilation=dilation, groups=groups).astype(jnp.bfloat16)
    wt3 = _toeplitz_weight(w3_, sc3, W, W, stride=1, padding=padding,
                           dilation=dilation, groups=groups).astype(jnp.bfloat16)
    wt4 = _toeplitz_weight(w4_, sc4, W, out_w4, stride=stride, padding=padding,
                           dilation=dilation, groups=groups).astype(jnp.bfloat16)

    sh2 = jnp.tile(shift2, W).reshape(1, WCo).astype(jnp.float32)
    sh3 = jnp.tile(shift3, W).reshape(1, WCo).astype(jnp.float32)
    sh4 = jnp.tile(shift4, out_w4).reshape(1, out_w4 * Cout).astype(jnp.float32)

    # Exact 0/1 H-direction nearest-upsample (B*H, B*h2) and its mean-pool transpose.
    idx = np.arange(B * H)
    Rnp = np.zeros((B * H, B * h2), np.float32)
    Rnp[idx, idx // r] = 1.0
    ups = jnp.asarray(Rnp)                           # (B*H,  B*h2)
    pool = jnp.asarray(Rnp.T / r)                    # (B*h2, B*H)

    # NCHW -> NHWC -> image-major lane-dense slab (N*H, W*C), bf16 once (halves DMA).
    x2d = (jnp.transpose(x_nchw, (0, 2, 3, 1))
              .reshape(N * H, WC).astype(jnp.bfloat16))

    kern = functools.partial(_scconv_kernel, H=H, h2=h2, stride=stride,
                             dilation=dilation)

    y = pl.pallas_call(
        kern,
        out_shape=jax.ShapeDtypeStruct((N * out_h4, out_w4 * Cout), x_nchw.dtype),
        grid=(N // B,),
        in_specs=[
            pl.BlockSpec((B * H, WC), lambda n: (n, 0)),                    # x slab
            pl.BlockSpec((3, WC, WCo), lambda n: (0, 0, 0)),                # wt2
            pl.BlockSpec((1, WCo), lambda n: (0, 0)),                       # sh2
            pl.BlockSpec((3, WC, WCo), lambda n: (0, 0, 0)),                # wt3
            pl.BlockSpec((1, WCo), lambda n: (0, 0)),                       # sh3
            pl.BlockSpec((3, WC, out_w4 * Cout), lambda n: (0, 0, 0)),      # wt4
            pl.BlockSpec((1, out_w4 * Cout), lambda n: (0, 0)),             # sh4
            pl.BlockSpec((B * h2, B * H), lambda n: (0, 0)),                # H-pool
            pl.BlockSpec((B * H, B * h2), lambda n: (0, 0)),                # H-upsample
        ],
        out_specs=pl.BlockSpec((B * out_h4, out_w4 * Cout), lambda n: (n, 0)),
        compiler_params=pltpu.CompilerParams(dimension_semantics=("parallel",)),
    )(x2d, wt2, sh2, wt3, sh3, wt4, sh4, pool, ups)

    return jnp.transpose(y.reshape(N, out_h4, out_w4, Cout), (0, 3, 1, 2))


# --------------------------------------------------------------------------- #
# Pure-JAX reference (f32 everywhere) for a numerical sanity check.
# --------------------------------------------------------------------------- #
def scconv_reference(x_nchw, params, *, stride, padding, dilation, groups, pooling_r,
                     eps=1e-5):
    x = jnp.transpose(x_nchw, (0, 2, 3, 1))

    def conv_bn(inp, p, s):
        w, gamma, beta, mean, var = p
        y = jax.lax.conv_general_dilated(
            inp, w, window_strides=(s, s),
            padding=[(padding, padding), (padding, padding)],
            rhs_dilation=(dilation, dilation),
            dimension_numbers=("NHWC", "HWIO", "NHWC"),
            feature_group_count=groups)
        inv = 1.0 / jnp.sqrt(var + eps)
        return y * (gamma * inv) + (beta - mean * gamma * inv)

    N, H, W, C = x.shape
    r = pooling_r
    h2, w2 = H // r, W // r
    pooled = x.reshape(N, h2, r, w2, r, C).mean(axis=(2, 4))
    y2 = conv_bn(pooled, params["k2"], 1)
    ih = (jnp.arange(H) * y2.shape[1]) // H
    iw = (jnp.arange(W) * y2.shape[2]) // W
    up = y2[:, ih][:, :, iw]
    out = conv_bn(x, params["k3"], 1) * jax.nn.sigmoid(x + up)
    out = conv_bn(out, params["k4"], stride)
    return jnp.transpose(out, (0, 3, 1, 2))


# --------------------------------------------------------------------------- #
# Deterministic synthetic parameters (Conv weight HWIO, BN eval-mode stats).
# --------------------------------------------------------------------------- #
def init_scconv_params(key, inplanes, planes, groups):
    def branch(k):
        kw, k1, k2, k3, k4 = jax.random.split(k, 5)
        w = 0.1 * jax.random.normal(kw, (3, 3, inplanes // groups, planes), jnp.float32)
        gamma = 1.0 + 0.1 * jax.random.normal(k1, (planes,), jnp.float32)
        beta = 0.1 * jax.random.normal(k2, (planes,), jnp.float32)
        mean = 0.1 * jax.random.normal(k3, (planes,), jnp.float32)
        var = jnp.abs(jax.random.normal(k4, (planes,), jnp.float32)) + 0.5
        return (w, gamma, beta, mean, var)

    k2k, k3k, k4k = jax.random.split(key, 3)
    return {"k2": branch(k2k), "k3": branch(k3k), "k4": branch(k4k)}


if __name__ == "__main__":
    key = jax.random.PRNGKey(0)
    kx, kp = jax.random.split(key)

    N, C, H, W = 4, 8, 16, 16
    stride, padding, dilation, groups, pooling_r = 1, 1, 1, 1, 4

    x = jax.random.normal(kx, (N, C, H, W), jnp.float32)
    params = init_scconv_params(kp, inplanes=C, planes=C, groups=groups)

    # batch_block=2 -> grid=(2,) so multi-step pipelining (and megacore sharding on
    # 2-TC chips) is actually exercised.
    out = scconv_forward(x, params, stride=stride, padding=padding,
                         dilation=dilation, groups=groups, pooling_r=pooling_r,
                         batch_block=2)
    out = jax.block_until_ready(out)
    assert out.shape == (N, C, H, W), out.shape

    ref = scconv_reference(x, params, stride=stride, padding=padding,
                           dilation=dilation, groups=groups, pooling_r=pooling_r)
    # Tolerance covers bf16 MXU operands / bf16 input cast vs. the f32 reference.
    np.testing.assert_allclose(np.asarray(out), np.asarray(ref), atol=1e-1, rtol=1e-1)

    print("KERNEL_OK")
</pallas_src>

<mosaic_0001>
module attributes {stable_mosaic.version = 11 : i64} {
  func.func @_scconv_kernel(%arg0: i32, %arg1: memref<32x128xbf16, #tpu.memory_space<vmem>>, %arg2: memref<3x128x128xbf16, #tpu.memory_space<vmem>>, %arg3: memref<1x128xf32, #tpu.memory_space<vmem>>, %arg4: memref<3x128x128xbf16, #tpu.memory_space<vmem>>, %arg5: memref<1x128xf32, #tpu.memory_space<vmem>>, %arg6: memref<3x128x128xbf16, #tpu.memory_space<vmem>>, %arg7: memref<1x128xf32, #tpu.memory_space<vmem>>, %arg8: memref<8x32xf32, #tpu.memory_space<vmem>>, %arg9: memref<32x8xf32, #tpu.memory_space<vmem>>, %arg10: memref<32x128xf32, #tpu.memory_space<vmem>>) attributes {dimension_semantics = [#tpu.dimension_semantics<parallel>], iteration_bounds = array<i64: 2>, scalar_prefetch = 0 : i64, scratch_operands = 0 : i64, tpu.core_type = #tpu.core_type<tc>, window_params = [{transform_indices = @transform_0, window_bounds = array<i64: 32, 128>}, {pipeline_mode = #tpu.pipeline_mode<synchronous>, transform_indices = @transform_1, window_bounds = array<i64: 3, 128, 128>}, {pipeline_mode = #tpu.pipeline_mode<synchronous>, transform_indices = @transform_2, window_bounds = array<i64: 1, 128>}, {pipeline_mode = #tpu.pipeline_mode<synchronous>, transform_indices = @transform_3, window_bounds = array<i64: 3, 128, 128>}, {pipeline_mode = #tpu.pipeline_mode<synchronous>, transform_indices = @transform_4, window_bounds = array<i64: 1, 128>}, {pipeline_mode = #tpu.pipeline_mode<synchronous>, transform_indices = @transform_5, window_bounds = array<i64: 3, 128, 128>}, {pipeline_mode = #tpu.pipeline_mode<synchronous>, transform_indices = @transform_6, window_bounds = array<i64: 1, 128>}, {pipeline_mode = #tpu.pipeline_mode<synchronous>, transform_indices = @transform_7, window_bounds = array<i64: 8, 32>}, {pipeline_mode = #tpu.pipeline_mode<synchronous>, transform_indices = @transform_8, window_bounds = array<i64: 32, 8>}, {transform_indices = @transform_9, window_bounds = array<i64: 32, 128>}]} {
    %c0 = arith.constant 0 : index
    %c0_0 = arith.constant 0 : index
    %0 = vector.load %arg1[%c0, %c0_0] : memref<32x128xbf16, #tpu.memory_space<vmem>>, vector<32x128xbf16>
    %1 = arith.extf %0 : vector<32x128xbf16> to vector<32x128xf32>
    %c0_1 = arith.constant 0 : index
    %c0_2 = arith.constant 0 : index
    %2 = vector.load %arg8[%c0_1, %c0_2] : memref<8x32xf32, #tpu.memory_space<vmem>>, vector<8x32xf32>
    %cst = arith.constant dense<0.000000e+00> : vector<8x128xf32>
    %3 = tpu.matmul %2, %1, %cst {dimension_numbers = #tpu.dot_dimension_numbers<[1], [0], [0], [1], [0, 0, 1, 1], [], []>} : vector<8x32xf32>, vector<32x128xf32>, vector<8x128xf32> -> vector<8x128xf32>
    %4 = arith.truncf %3 : vector<8x128xf32> to vector<8x128xbf16>
    %5 = tpu.iota {dimensions = array<i32: 0>} : vector<8x128xi32>
    %c4_i32 = arith.constant 4 : i32
    %c0_i32 = arith.constant 0 : i32
    %6 = arith.cmpi eq, %c4_i32, %c0_i32 : i32
    %c1_i32 = arith.constant 1 : i32
    %7 = arith.select %6, %c1_i32, %c4_i32 : i32
    %8 = vector.broadcast %7 : i32 to vector<8x128xi32>
    %9 = arith.remsi %5, %8 : vector<8x128xi32>
    %c0_i32_3 = arith.constant 0 : i32
    %10 = vector.broadcast %c0_i32_3 : i32 to vector<8x128xi32>
    %11 = arith.cmpi ne, %9, %10 : vector<8x128xi32>
    %c0_i32_4 = arith.constant 0 : i32
    %12 = vector.broadcast %c0_i32_4 : i32 to vector<8x128xi32>
    %13 = arith.cmpi slt, %9, %12 : vector<8x128xi32>
    %c0_i32_5 = arith.constant 0 : i32
    %14 = arith.cmpi slt, %7, %c0_i32_5 : i32
    %15 = vector.broadcast %14 : i1 to vector<8x128xi1>
    %16 = vector.broadcast %15 : vector<8x128xi1> to vector<8x128xi1>
    %17 = arith.xori %13, %16 : vector<8x128xi1>
    %18 = arith.andi %17, %11 : vector<8x128xi1>
    %19 = vector.broadcast %7 : i32 to vector<8x128xi32>
    %20 = arith.addi %9, %19 : vector<8x128xi32>
    %21 = arith.select %18, %20, %9 : vector<8x128xi1>, vector<8x128xi32>
    %cst_6 = arith.constant 0.000000e+00 : bf16
    %22 = vector.broadcast %cst_6 : bf16 to vector<1x128xbf16>
    %23 = vector.extract_strided_slice %4 {offsets = [0, 0], sizes = [7, 128], strides = [1, 1]} : vector<8x128xbf16> to vector<7x128xbf16>
    %24 = tpu.concatenate %22, %23 in 0 : vector<1x128xbf16>, vector<7x128xbf16> -> vector<8x128xbf16>
    %c1_i32_7 = arith.constant 1 : i32
    %25 = vector.broadcast %c1_i32_7 : i32 to vector<8x128xi32>
    %26 = arith.cmpi sge, %21, %25 : vector<8x128xi32>
    %cst_8 = arith.constant 0.000000e+00 : bf16
    %27 = vector.broadcast %cst_8 : bf16 to vector<8x128xbf16>
    %28 = arith.select %26, %24, %27 : vector<8x128xi1>, vector<8x128xbf16>
    %c0_9 = arith.constant 0 : index
    %c0_10 = arith.constant 0 : index
    %c0_11 = arith.constant 0 : index
    %29 = vector.load %arg2[%c0_9, %c0_10, %c0_11] : memref<3x128x128xbf16, #tpu.memory_space<vmem>>, vector<1x128x128xbf16>
    %30 = vector.shape_cast %29 : vector<1x128x128xbf16> to vector<128x128xbf16>
    %cst_12 = arith.constant dense<0.000000e+00> : vector<8x128xf32>
    %31 = tpu.matmul %28, %30, %cst_12 {dimension_numbers = #tpu.dot_dimension_numbers<[1], [0], [0], [1], [0, 0, 1, 1], [], []>} : vector<8x128xbf16>, vector<128x128xbf16>, vector<8x128xf32> -> vector<8x128xf32>
    %c1 = arith.constant 1 : index
    %c0_13 = arith.constant 0 : index
    %c0_14 = arith.constant 0 : index
    %32 = vector.load %arg2[%c1, %c0_13, %c0_14] : memref<3x128x128xbf16, #tpu.memory_space<vmem>>, vector<1x128x128xbf16>
    %33 = vector.shape_cast %32 : vector<1x128x128xbf16> to vector<128x128xbf16>
    %cst_15 = arith.constant dense<0.000000e+00> : vector<8x128xf32>
    %34 = tpu.matmul %4, %33, %cst_15 {dimension_numbers = #tpu.dot_dimension_numbers<[1], [0], [0], [1], [0, 0, 1, 1], [], []>} : vector<8x128xbf16>, vector<128x128xbf16>, vector<8x128xf32> -> vector<8x128xf32>
    %35 = arith.addf %31, %34 : vector<8x128xf32>
    %36 = vector.extract_strided_slice %4 {offsets = [1, 0], sizes = [7, 128], strides = [1, 1]} : vector<8x128xbf16> to vector<7x128xbf16>
    %37 = tpu.concatenate %36, %22 in 0 : vector<7x128xbf16>, vector<1x128xbf16> -> vector<8x128xbf16>
    %c3_i32 = arith.constant 3 : i32
    %38 = vector.broadcast %c3_i32 : i32 to vector<8x128xi32>
    %39 = arith.cmpi slt, %21, %38 : vector<8x128xi32>
    %cst_16 = arith.constant 0.000000e+00 : bf16
    %40 = vector.broadcast %cst_16 : bf16 to vector<8x128xbf16>
    %41 = arith.select %39, %37, %40 : vector<8x128xi1>, vector<8x128xbf16>
    %c2 = arith.constant 2 : index
    %c0_17 = arith.constant 0 : index
    %c0_18 = arith.constant 0 : index
    %42 = vector.load %arg2[%c2, %c0_17, %c0_18] : memref<3x128x128xbf16, #tpu.memory_space<vmem>>, vector<1x128x128xbf16>
    %43 = vector.shape_cast %42 : vector<1x128x128xbf16> to vector<128x128xbf16>
    %cst_19 = arith.constant dense<0.000000e+00> : vector<8x128xf32>
    %44 = tpu.matmul %41, %43, %cst_19 {dimension_numbers = #tpu.dot_dimension_numbers<[1], [0], [0], [1], [0, 0, 1, 1], [], []>} : vector<8x128xbf16>, vector<128x128xbf16>, vector<8x128xf32> -> vector<8x128xf32>
    %45 = arith.addf %35, %44 : vector<8x128xf32>
    %c0_20 = arith.constant 0 : index
    %c0_21 = arith.constant 0 : index
    %46 = vector.load %arg3[%c0_20, %c0_21] : memref<1x128xf32, #tpu.memory_space<vmem>>, vector<1x128xf32>
    %47 = vector.broadcast %46 : vector<1x128xf32> to vector<8x128xf32>
    %48 = arith.addf %45, %47 : vector<8x128xf32>
    %c0_22 = arith.constant 0 : index
    %c0_23 = arith.constant 0 : index
    %49 = vector.load %arg9[%c0_22, %c0_23] : memref<32x8xf32, #tpu.memory_space<vmem>>, vector<32x8xf32>
    %cst_24 = arith.constant dense<0.000000e+00> : vector<32x128xf32>
    %50 = tpu.matmul %49, %48, %cst_24 {dimension_numbers = #tpu.dot_dimension_numbers<[1], [0], [0], [1], [0, 0, 1, 1], [], []>} : vector<32x8xf32>, vector<8x128xf32>, vector<32x128xf32> -> vector<32x128xf32>
    %51 = tpu.iota {dimensions = array<i32: 0>} : vector<32x128xi32>
    %c16_i32 = arith.constant 16 : i32
    %c0_i32_25 = arith.constant 0 : i32
    %52 = arith.cmpi eq, %c16_i32, %c0_i32_25 : i32
    %c1_i32_26 = arith.constant 1 : i32
    %53 = arith.select %52, %c1_i32_26, %c16_i32 : i32
    %54 = vector.broadcast %53 : i32 to vector<32x128xi32>
    %55 = arith.remsi %51, %54 : vector<32x128xi32>
    %c0_i32_27 = arith.constant 0 : i32
    %56 = vector.broadcast %c0_i32_27 : i32 to vector<32x128xi32>
    %57 = arith.cmpi ne, %55, %56 : vector<32x128xi32>
    %c0_i32_28 = arith.constant 0 : i32
    %58 = vector.broadcast %c0_i32_28 : i32 to vector<32x128xi32>
    %59 = arith.cmpi slt, %55, %58 : vector<32x128xi32>
    %c0_i32_29 = arith.constant 0 : i32
    %60 = arith.cmpi slt, %53, %c0_i32_29 : i32
    %61 = vector.broadcast %60 : i1 to vector<32x128xi1>
    %62 = vector.broadcast %61 : vector<32x128xi1> to vector<32x128xi1>
    %63 = arith.xori %59, %62 : vector<32x128xi1>
    %64 = arith.andi %63, %57 : vector<32x128xi1>
    %65 = vector.broadcast %53 : i32 to vector<32x128xi32>
    %66 = arith.addi %55, %65 : vector<32x128xi32>
    %67 = arith.select %64, %66, %55 : vector<32x128xi1>, vector<32x128xi32>
    %cst_30 = arith.constant 0.000000e+00 : bf16
    %68 = vector.broadcast %cst_30 : bf16 to vector<1x128xbf16>
    %69 = vector.extract_strided_slice %0 {offsets = [0, 0], sizes = [31, 128], strides = [1, 1]} : vector<32x128xbf16> to vector<31x128xbf16>
    %70 = tpu.concatenate %68, %69 in 0 : vector<1x128xbf16>, vector<31x128xbf16> -> vector<32x128xbf16>
    %c1_i32_31 = arith.constant 1 : i32
    %71 = vector.broadcast %c1_i32_31 : i32 to vector<32x128xi32>
    %72 = arith.cmpi sge, %67, %71 : vector<32x128xi32>
    %cst_32 = arith.constant 0.000000e+00 : bf16
    %73 = vector.broadcast %cst_32 : bf16 to vector<32x128xbf16>
    %74 = arith.select %72, %70, %73 : vector<32x128xi1>, vector<32x128xbf16>
    %c0_33 = arith.constant 0 : index
    %c0_34 = arith.constant 0 : index
    %c0_35 = arith.constant 0 : index
    %75 = vector.load %arg4[%c0_33, %c0_34, %c0_35] : memref<3x128x128xbf16, #tpu.memory_space<vmem>>, vector<1x128x128xbf16>
    %76 = vector.shape_cast %75 : vector<1x128x128xbf16> to vector<128x128xbf16>
    %cst_36 = arith.constant dense<0.000000e+00> : vector<32x128xf32>
    %77 = tpu.matmul %74, %76, %cst_36 {dimension_numbers = #tpu.dot_dimension_numbers<[1], [0], [0], [1], [0, 0, 1, 1], [], []>} : vector<32x128xbf16>, vector<128x128xbf16>, vector<32x128xf32> -> vector<32x128xf32>
    %c1_37 = arith.constant 1 : index
    %c0_38 = arith.constant 0 : index
    %c0_39 = arith.constant 0 : index
    %78 = vector.load %arg4[%c1_37, %c0_38, %c0_39] : memref<3x128x128xbf16, #tpu.memory_space<vmem>>, vector<1x128x128xbf16>
    %79 = vector.shape_cast %78 : vector<1x128x128xbf16> to vector<128x128xbf16>
    %cst_40 = arith.constant dense<0.000000e+00> : vector<32x128xf32>
    %80 = tpu.matmul %0, %79, %cst_40 {dimension_numbers = #tpu.dot_dimension_numbers<[1], [0], [0], [1], [0, 0, 1, 1], [], []>} : vector<32x128xbf16>, vector<128x128xbf16>, vector<32x128xf32> -> vector<32x128xf32>
    %81 = arith.addf %77, %80 : vector<32x128xf32>
    %82 = vector.extract_strided_slice %0 {offsets = [1, 0], sizes = [31, 128], strides = [1, 1]} : vector<32x128xbf16> to vector<31x128xbf16>
    %83 = tpu.concatenate %82, %68 in 0 : vector<31x128xbf16>, vector<1x128xbf16> -> vector<32x128xbf16>
    %c15_i32 = arith.constant 15 : i32
    %84 = vector.broadcast %c15_i32 : i32 to vector<32x128xi32>
    %85 = arith.cmpi slt, %67, %84 : vector<32x128xi32>
    %cst_41 = arith.constant 0.000000e+00 : bf16
    %86 = vector.broadcast %cst_41 : bf16 to vector<32x128xbf16>
    %87 = arith.select %85, %83, %86 : vector<32x128xi1>, vector<32x128xbf16>
    %c2_42 = arith.constant 2 : index
    %c0_43 = arith.constant 0 : index
    %c0_44 = arith.constant 0 : index
    %88 = vector.load %arg4[%c2_42, %c0_43, %c0_44] : memref<3x128x128xbf16, #tpu.memory_space<vmem>>, vector<1x128x128xbf16>
    %89 = vector.shape_cast %88 : vector<1x128x128xbf16> to vector<128x128xbf16>
    %cst_45 = arith.constant dense<0.000000e+00> : vector<32x128xf32>
    %90 = tpu.matmul %87, %89, %cst_45 {dimension_numbers = #tpu.dot_dimension_numbers<[1], [0], [0], [1], [0, 0, 1, 1], [], []>} : vector<32x128xbf16>, vector<128x128xbf16>, vector<32x128xf32> -> vector<32x128xf32>
    %91 = arith.addf %81, %90 : vector<32x128xf32>
    %c0_46 = arith.constant 0 : index
    %c0_47 = arith.constant 0 : index
    %92 = vector.load %arg5[%c0_46, %c0_47] : memref<1x128xf32, #tpu.memory_space<vmem>>, vector<1x128xf32>
    %93 = vector.broadcast %92 : vector<1x128xf32> to vector<32x128xf32>
    %94 = arith.addf %91, %93 : vector<32x128xf32>
    %95 = arith.addf %1, %50 : vector<32x128xf32>
    %96 = arith.negf %95 : vector<32x128xf32>
    %97 = math.exp %96 : vector<32x128xf32>
    %cst_48 = arith.constant 1.000000e+00 : f32
    %98 = vector.broadcast %cst_48 : f32 to vector<32x128xf32>
    %99 = arith.addf %98, %97 : vector<32x128xf32>
    %100 = arith.divf %98, %99 : vector<32x128xf32>
    %101 = arith.mulf %94, %100 : vector<32x128xf32>
    %102 = arith.truncf %101 : vector<32x128xf32> to vector<32x128xbf16>
    %103 = tpu.iota {dimensions = array<i32: 0>} : vector<32x128xi32>
    %c16_i32_49 = arith.constant 16 : i32
    %c0_i32_50 = arith.constant 0 : i32
    %104 = arith.cmpi eq, %c16_i32_49, %c0_i32_50 : i32
    %c1_i32_51 = arith.constant 1 : i32
    %105 = arith.select %104, %c1_i32_51, %c16_i32_49 : i32
    %106 = vector.broadcast %105 : i32 to vector<32x128xi32>
    %107 = arith.remsi %103, %106 : vector<32x128xi32>
    %c0_i32_52 = arith.constant 0 : i32
    %108 = vector.broadcast %c0_i32_52 : i32 to vector<32x128xi32>
    %109 = arith.cmpi ne, %107, %108 : vector<32x128xi32>
    %c0_i32_53 = arith.constant 0 : i32
    %110 = vector.broadcast %c0_i32_53 : i32 to vector<32x128xi32>
    %111 = arith.cmpi slt, %107, %110 : vector<32x128xi32>
    %c0_i32_54 = arith.constant 0 : i32
    %112 = arith.cmpi slt, %105, %c0_i32_54 : i32
    %113 = vector.broadcast %112 : i1 to vector<32x128xi1>
    %114 = vector.broadcast %113 : vector<32x128xi1> to vector<32x128xi1>
    %115 = arith.xori %111, %114 : vector<32x128xi1>
    %116 = arith.andi %115, %109 : vector<32x128xi1>
    %117 = vector.broadcast %105 : i32 to vector<32x128xi32>
    %118 = arith.addi %107, %117 : vector<32x128xi32>
    %119 = arith.select %116, %118, %107 : vector<32x128xi1>, vector<32x128xi32>
    %cst_55 = arith.constant 0.000000e+00 : bf16
    %120 = vector.broadcast %cst_55 : bf16 to vector<1x128xbf16>
    %121 = vector.extract_strided_slice %102 {offsets = [0, 0], sizes = [31, 128], strides = [1, 1]} : vector<32x128xbf16> to vector<31x128xbf16>
    %122 = tpu.concatenate %120, %121 in 0 : vector<1x128xbf16>, vector<31x128xbf16> -> vector<32x128xbf16>
    %c1_i32_56 = arith.constant 1 : i32
    %123 = vector.broadcast %c1_i32_56 : i32 to vector<32x128xi32>
    %124 = arith.cmpi sge, %119, %123 : vector<32x128xi32>
    %cst_57 = arith.constant 0.000000e+00 : bf16
    %125 = vector.broadcast %cst_57 : bf16 to vector<32x128xbf16>
    %126 = arith.select %124, %122, %125 : vector<32x128xi1>, vector<32x128xbf16>
    %c0_58 = arith.constant 0 : index
    %c0_59 = arith.constant 0 : index
    %c0_60 = arith.constant 0 : index
    %127 = vector.load %arg6[%c0_58, %c0_59, %c0_60] : memref<3x128x128xbf16, #tpu.memory_space<vmem>>, vector<1x128x128xbf16>
    %128 = vector.shape_cast %127 : vector<1x128x128xbf16> to vector<128x128xbf16>
    %cst_61 = arith.constant dense<0.000000e+00> : vector<32x128xf32>
    %129 = tpu.matmul %126, %128, %cst_61 {dimension_numbers = #tpu.dot_dimension_numbers<[1], [0], [0], [1], [0, 0, 1, 1], [], []>} : vector<32x128xbf16>, vector<128x128xbf16>, vector<32x128xf32> -> vector<32x128xf32>
    %c1_62 = arith.constant 1 : index
    %c0_63 = arith.constant 0 : index
    %c0_64 = arith.constant 0 : index
    %130 = vector.load %arg6[%c1_62, %c0_63, %c0_64] : memref<3x128x128xbf16, #tpu.memory_space<vmem>>, vector<1x128x128xbf16>
    %131 = vector.shape_cast %130 : vector<1x128x128xbf16> to vector<128x128xbf16>
    %cst_65 = arith.constant dense<0.000000e+00> : vector<32x128xf32>
    %132 = tpu.matmul %102, %131, %cst_65 {dimension_numbers = #tpu.dot_dimension_numbers<[1], [0], [0], [1], [0, 0, 1, 1], [], []>} : vector<32x128xbf16>, vector<128x128xbf16>, vector<32x128xf32> -> vector<32x128xf32>
    %133 = arith.addf %129, %132 : vector<32x128xf32>
    %134 = vector.extract_strided_slice %102 {offsets = [1, 0], sizes = [31, 128], strides = [1, 1]} : vector<32x128xbf16> to vector<31x128xbf16>
    %135 = tpu.concatenate %134, %120 in 0 : vector<31x128xbf16>, vector<1x128xbf16> -> vector<32x128xbf16>
    %c15_i32_66 = arith.constant 15 : i32
    %136 = vector.broadcast %c15_i32_66 : i32 to vector<32x128xi32>
    %137 = arith.cmpi slt, %119, %136 : vector<32x128xi32>
    %cst_67 = arith.constant 0.000000e+00 : bf16
    %138 = vector.broadcast %cst_67 : bf16 to vector<32x128xbf16>
    %139 = arith.select %137, %135, %138 : vector<32x128xi1>, vector<32x128xbf16>
    %c2_68 = arith.constant 2 : index
    %c0_69 = arith.constant 0 : index
    %c0_70 = arith.constant 0 : index
    %140 = vector.load %arg6[%c2_68, %c0_69, %c0_70] : memref<3x128x128xbf16, #tpu.memory_space<vmem>>, vector<1x128x128xbf16>
    %141 = vector.shape_cast %140 : vector<1x128x128xbf16> to vector<128x128xbf16>
    %cst_71 = arith.constant dense<0.000000e+00> : vector<32x128xf32>
    %142 = tpu.matmul %139, %141, %cst_71 {dimension_numbers = #tpu.dot_dimension_numbers<[1], [0], [0], [1], [0, 0, 1, 1], [], []>} : vector<32x128xbf16>, vector<128x128xbf16>, vector<32x128xf32> -> vector<32x128xf32>
    %143 = arith.addf %133, %142 : vector<32x128xf32>
    %c0_72 = arith.constant 0 : index
    %c0_73 = arith.constant 0 : index
    %144 = vector.load %arg7[%c0_72, %c0_73] : memref<1x128xf32, #tpu.memory_space<vmem>>, vector<1x128xf32>
    %145 = vector.broadcast %144 : vector<1x128xf32> to vector<32x128xf32>
    %146 = arith.addf %143, %145 : vector<32x128xf32>
    %c0_74 = arith.constant 0 : index
    %c0_75 = arith.constant 0 : index
    %147 = vector.load %arg10[%c0_74, %c0_75] : memref<32x128xf32, #tpu.memory_space<vmem>>, vector<32x128xf32>
    tpu.vector_store %arg10[%c0_74, %c0_75], %146 {strides = array<i32>} : memref<32x128xf32, #tpu.memory_space<vmem>>, vector<32x128xf32>,
    return
  }
  func.func @transform_0(%arg0: i32) -> (i32, i32) {
    %c0_i32 = arith.constant 0 : i32
    %c0_i32_0 = arith.constant 0 : i32
    return %arg0, %c0_i32 : i32, i32
  }
  func.func @transform_1(%arg0: i32) -> (i32, i32, i32) {
    %c0_i32 = arith.constant 0 : i32
    %c0_i32_0 = arith.constant 0 : i32
    %c0_i32_1 = arith.constant 0 : i32
    %c0_i32_2 = arith.constant 0 : i32
    return %c0_i32, %c0_i32_0, %c0_i32_1 : i32, i32, i32
  }
  func.func @transform_2(%arg0: i32) -> (i32, i32) {
    %c0_i32 = arith.constant 0 : i32
    %c0_i32_0 = arith.constant 0 : i32
    %c0_i32_1 = arith.constant 0 : i32
    return %c0_i32, %c0_i32_0 : i32, i32
  }
  func.func @transform_3(%arg0: i32) -> (i32, i32, i32) {
    %c0_i32 = arith.constant 0 : i32
    %c0_i32_0 = arith.constant 0 : i32
    %c0_i32_1 = arith.constant 0 : i32
    %c0_i32_2 = arith.constant 0 : i32
    return %c0_i32, %c0_i32_0, %c0_i32_1 : i32, i32, i32
  }
  func.func @transform_4(%arg0: i32) -> (i32, i32) {
    %c0_i32 = arith.constant 0 : i32
    %c0_i32_0 = arith.constant 0 : i32
    %c0_i32_1 = arith.constant 0 : i32
    return %c0_i32, %c0_i32_0 : i32, i32
  }
  func.func @transform_5(%arg0: i32) -> (i32, i32, i32) {
    %c0_i32 = arith.constant 0 : i32
    %c0_i32_0 = arith.constant 0 : i32
    %c0_i32_1 = arith.constant 0 : i32
    %c0_i32_2 = arith.constant 0 : i32
    return %c0_i32, %c0_i32_0, %c0_i32_1 : i32, i32, i32
  }
  func.func @transform_6(%arg0: i32) -> (i32, i32) {
    %c0_i32 = arith.constant 0 : i32
    %c0_i32_0 = arith.constant 0 : i32
    %c0_i32_1 = arith.constant 0 : i32
    return %c0_i32, %c0_i32_0 : i32, i32
  }
  func.func @transform_7(%arg0: i32) -> (i32, i32) {
    %c0_i32 = arith.constant 0 : i32
    %c0_i32_0 = arith.constant 0 : i32
    %c0_i32_1 = arith.constant 0 : i32
    return %c0_i32, %c0_i32_0 : i32, i32
  }
  func.func @transform_8(%arg0: i32) -> (i32, i32) {
    %c0_i32 = arith.constant 0 : i32
    %c0_i32_0 = arith.constant 0 : i32
    %c0_i32_1 = arith.constant 0 : i32
    return %c0_i32, %c0_i32_0 : i32, i32
  }
  func.func @transform_9(%arg0: i32) -> (i32, i32) {
    %c0_i32 = arith.constant 0 : i32
    %c0_i32_0 = arith.constant 0 : i32
    return %arg0, %c0_i32 : i32, i32
  }
}

</mosaic_0001>

<llo_original>
// kernel: tpu_custom_call.1
$region0: #{tpu_custom_call.1}
  #allocation0 [shape = 'u32[]', space=smem, size = 0x4, offset = 0x4, fixed_abs, tag = 'smem constant byte address 0x4 - core index']
  #allocation1 [shape = 'u32[144,128]{1,0:T(1,128)}', space=vmem, size = 0x12000, scoped, tag = 'internal scratch']
  %s0 = inlined_call_operand.vmem [shape: bf16[64,128], index: 0, kind: input, shape index: {}]
  %s1 = inlined_call_operand.hbm [shape: bf16[3,128,128], index: 1, kind: input, shape index: {}]
  %s2 = inlined_call_operand.vmem [shape: f32[1,128], index: 2, kind: input, shape index: {}]
  %s3 = inlined_call_operand.hbm [shape: bf16[3,128,128], index: 3, kind: input, shape index: {}]
  %s4 = inlined_call_operand.vmem [shape: f32[1,128], index: 4, kind: input, shape index: {}]
  %s5 = inlined_call_operand.hbm [shape: bf16[3,128,128], index: 5, kind: input, shape index: {}]
  %s6 = inlined_call_operand.vmem [shape: f32[1,128], index: 6, kind: input, shape index: {}]
  %s7 = inlined_call_operand.vmem [shape: f32[8,32], index: 7, kind: input, shape index: {}]
  %s8 = inlined_call_operand.vmem [shape: f32[32,8], index: 8, kind: input, shape index: {}]
  %s9 = inlined_call_operand.hbm [shape: f32[64,128], index: 9, kind: output, shape index: {}]
  %s10 = sld [smem:[#allocation0]]
  $region81: #{tpu_custom_call.1} parent=0
    _
  %s12 = ssub.s32 1, %s10
  %s13 = scalar_select 0, %s12, %s10
  $region1: #{tpu_custom_call.1} parent=0
    #allocation2 [shape = 'u8[98304]{0}', space=vmem, size = 0x18000, scoped, tag = 'input window, operand 1, single buffered']
    #allocation3 [shape = 's32[2]{0}', space=sflag, size = 0x8, scoped, tag = 'scoped memory for tpu_custom_call.1']
    #allocation4 [shape = 's32[2]{0}', space=sflag, size = 0x8, scoped, tag = 'scoped memory for tpu_custom_call.1']
    #allocation5 [shape = 'u8[98304]{0}', space=vmem, size = 0x18000, scoped, tag = 'input window, operand 3, single buffered']
    #allocation6 [shape = 's32[1]{0}', space=sflag, size = 0x4, scoped, tag = 'scoped memory for tpu_custom_call.1']
    #allocation7 [shape = 'u8[98304]{0}', space=vmem, size = 0x18000, scoped, tag = 'input window, operand 5, single buffered']
    #allocation8 [shape = 'u8[32768]{0}', space=vmem, size = 0x8000, scoped, tag = 'output window, operand 0']
    %14 = vsyncpa [#allocation3], 0
    %15 = vsyncpa [#allocation6], 0
    %16 = vsyncpa [#allocation4], 0
    %s17 = scalar_lea.sflag [#allocation4], 1
    %18 = vsyncpa %s17, 0
    loop: start=0, step=1, limit=4
    $region2: #{tpu_custom_call.1} parent=1 // loop_pre_header
      _
    $region3: #{tpu_custom_call.1} parent=1 // loop_header
      %s20 = sphi 0, %s24
      %p21 = scmp.ge.s32.totalorder %s20, 4
      %s30 = sphi 0, %s32
      %s33 = sphi 0, %s30
      %s34 = sphi 0, %s33
      %s50 = sphi 0, %s34
      %s54 = sphi 0, %s54
      %s56 = sphi 0, %s54
      %s57 = sphi 0, %s56
      %s71 = sphi 0, %s57
      %s75 = sphi 0, %s75
      %s77 = sphi 0, %s75
      %s78 = sphi 0, %s77
      %s92 = sphi 0, %s78
      %s96 = sphi 0, %s96
      %s98 = sphi 0, %s96
      %s99 = sphi 0, %s98
      %s113 = sphi 0, %s99
      %s117 = sphi 0, %s117
      %s119 = sphi 0, %s117
      %s120 = sphi 0, %s119
      %s134 = sphi 0, %s120
      %s138 = sphi 0, %s138
      %s140 = sphi 0, %s138
      %s141 = sphi 0, %s140
      %s155 = sphi 0, %s141
      %s159 = sphi 0, %s159
      %s161 = sphi 0, %s159
      %s162 = sphi 0, %s161
      %s176 = sphi 0, %s162
      %s180 = sphi 0, %s180
      %s182 = sphi 0, %s180
      %s183 = sphi 0, %s182
      %s197 = sphi 0, %s183
      %s201 = sphi 0, %s201
      %s203 = sphi 0, %s201
      %s204 = sphi 0, %s203
      %s218 = sphi 0, %s204
      %s224 = sphi 0, %s226
      %s227 = sphi 0, %s224
      %s228 = sphi 0, %s227
      %s244 = sphi 0, %s228
    $region4: #{tpu_custom_call.1} parent=1 // loop_header_branch
      %23 = sbr.rel (%p21) target = $region8
    $region5: #{tpu_custom_call.1} parent=1 // loop_body
      %s25 = ssub.s32 %s20, 1
      %s26 = ssub.s32 %s20, 2
      %s27 = sadd.s32 %s20, 1
      %s28 = ssub.s32 %s20, %s27
      %p29 = scmp.eq.s32.totalorder %s28, 0
      %s31 = sadd.s32 %s30, 1
      %s32 = scalar_select %p29, %s30, %s31
      %p35 = pneg %p29
      %p36 = scmp.eq.s32.totalorder %s20, 1
      %p37 = por %p35, %p36
      %p38 = scmp.ne.s32.totalorder %s30, %s33
      %p39 = scmp.eq.s32.totalorder %s20, 0
      %p40 = por %p38, %p39
      %p41 = scmp.ne.s32.totalorder %s30, %s33
      %p42 = scmp.eq.s32.totalorder %s25, 1
      %p43 = por %p41, %p42
      %p44 = scmp.ne.s32.totalorder %s33, %s34
      %p45 = scmp.eq.s32.totalorder %s25, 0
      %p46 = por %p44, %p45
      %p47 = scmp.ne.s32.totalorder %s33, %s34
      %p48 = scmp.eq.s32.totalorder %s26, 1
      %p49 = por %p47, %p48
      %p51 = scmp.ne.s32.totalorder %s34, %s50
      %p52 = scmp.eq.s32.totalorder %s26, 0
      %p53 = por %p51, %p52
      %s55 = sadd.s32 %s54, 1
      %p58 = scmp.eq.s32.totalorder %s20, 1
      %p59 = scmp.ne.s32.totalorder %s54, %s56
      %p60 = scmp.eq.s32.totalorder %s20, 0
      %p61 = por %p59, %p60
      %p62 = scmp.ne.s32.totalorder %s54, %s56
      %p63 = scmp.eq.s32.totalorder %s25, 1
      %p64 = por %p62, %p63
      %p65 = scmp.ne.s32.totalorder %s56, %s57
      %p66 = scmp.eq.s32.totalorder %s25, 0
      %p67 = por %p65, %p66
      %p68 = scmp.ne.s32.totalorder %s56, %s57
      %p69 = scmp.eq.s32.totalorder %s26, 1
      %p70 = por %p68, %p69
      %p72 = scmp.ne.s32.totalorder %s57, %s71
      %p73 = scmp.eq.s32.totalorder %s26, 0
      %p74 = por %p72, %p73
      %s76 = sadd.s32 %s75, 1
      %p79 = scmp.eq.s32.totalorder %s20, 1
      %p80 = scmp.ne.s32.totalorder %s75, %s77
      %p81 = scmp.eq.s32.totalorder %s20, 0
      %p82 = por %p80, %p81
      %p83 = scmp.ne.s32.totalorder %s75, %s77
      %p84 = scmp.eq.s32.totalorder %s25, 1
      %p85 = por %p83, %p84
      %p86 = scmp.ne.s32.totalorder %s77, %s78
      %p87 = scmp.eq.s32.totalorder %s25, 0
      %p88 = por %p86, %p87
      %p89 = scmp.ne.s32.totalorder %s77, %s78
      %p90 = scmp.eq.s32.totalorder %s26, 1
      %p91 = por %p89, %p90
      %p93 = scmp.ne.s32.totalorder %s78, %s92
      %p94 = scmp.eq.s32.totalorder %s26, 0
      %p95 = por %p93, %p94
      %s97 = sadd.s32 %s96, 1
      %p100 = scmp.eq.s32.totalorder %s20, 1
      %p101 = scmp.ne.s32.totalorder %s96, %s98
      %p102 = scmp.eq.s32.totalorder %s20, 0
      %p103 = por %p101, %p102
      %p104 = scmp.ne.s32.totalorder %s96, %s98
      %p105 = scmp.eq.s32.totalorder %s25, 1
      %p106 = por %p104, %p105
      %p107 = scmp.ne.s32.totalorder %s98, %s99
      %p108 = scmp.eq.s32.totalorder %s25, 0
      %p109 = por %p107, %p108
      %p110 = scmp.ne.s32.totalorder %s98, %s99
      %p111 = scmp.eq.s32.totalorder %s26, 1
      %p112 = por %p110, %p111
      %p114 = scmp.ne.s32.totalorder %s99, %s113
      %p115 = scmp.eq.s32.totalorder %s26, 0
      %p116 = por %p114, %p115
      %s118 = sadd.s32 %s117, 1
      %p121 = scmp.eq.s32.totalorder %s20, 1
      %p122 = scmp.ne.s32.totalorder %s117, %s119
      %p123 = scmp.eq.s32.totalorder %s20, 0
      %p124 = por %p122, %p123
      %p125 = scmp.ne.s32.totalorder %s117, %s119
      %p126 = scmp.eq.s32.totalorder %s25, 1
      %p127 = por %p125, %p126
      %p128 = scmp.ne.s32.totalorder %s119, %s120
      %p129 = scmp.eq.s32.totalorder %s25, 0
      %p130 = por %p128, %p129
      %p131 = scmp.ne.s32.totalorder %s119, %s120
      %p132 = scmp.eq.s32.totalorder %s26, 1
      %p133 = por %p131, %p132
      %p135 = scmp.ne.s32.totalorder %s120, %s134
      %p136 = scmp.eq.s32.totalorder %s26, 0
      %p137 = por %p135, %p136
      %s139 = sadd.s32 %s138, 1
      %p142 = scmp.eq.s32.totalorder %s20, 1
      %p143 = scmp.ne.s32.totalorder %s138, %s140
      %p144 = scmp.eq.s32.totalorder %s20, 0
      %p145 = por %p143, %p144
      %p146 = scmp.ne.s32.totalorder %s138, %s140
      %p147 = scmp.eq.s32.totalorder %s25, 1
      %p148 = por %p146, %p147
      %p149 = scmp.ne.s32.totalorder %s140, %s141
      %p150 = scmp.eq.s32.totalorder %s25, 0
      %p151 = por %p149, %p150
      %p152 = scmp.ne.s32.totalorder %s140, %s141
      %p153 = scmp.eq.s32.totalorder %s26, 1
      %p154 = por %p152, %p153
      %p156 = scmp.ne.s32.totalorder %s141, %s155
      %p157 = scmp.eq.s32.totalorder %s26, 0
      %p158 = por %p156, %p157
      %s160 = sadd.s32 %s159, 1
      %p163 = scmp.eq.s32.totalorder %s20, 1
      %p164 = scmp.ne.s32.totalorder %s159, %s161
      %p165 = scmp.eq.s32.totalorder %s20, 0
      %p166 = por %p164, %p165
      %p167 = scmp.ne.s32.totalorder %s159, %s161
      %p168 = scmp.eq.s32.totalorder %s25, 1
      %p169 = por %p167, %p168
      %p170 = scmp.ne.s32.totalorder %s161, %s162
      %p171 = scmp.eq.s32.totalorder %s25, 0
      %p172 = por %p170, %p171
      %p173 = scmp.ne.s32.totalorder %s161, %s162
      %p174 = scmp.eq.s32.totalorder %s26, 1
      %p175 = por %p173, %p174
      %p177 = scmp.ne.s32.totalorder %s162, %s176
      %p178 = scmp.eq.s32.totalorder %s26, 0
      %p179 = por %p177, %p178
      %s181 = sadd.s32 %s180, 1
      %p184 = scmp.eq.s32.totalorder %s20, 1
      %p185 = scmp.ne.s32.totalorder %s180, %s182
      %p186 = scmp.eq.s32.totalorder %s20, 0
      %p187 = por %p185, %p186
      %p188 = scmp.ne.s32.totalorder %s180, %s182
      %p189 = scmp.eq.s32.totalorder %s25, 1
      %p190 = por %p188, %p189
      %p191 = scmp.ne.s32.totalorder %s182, %s183
      %p192 = scmp.eq.s32.totalorder %s25, 0
      %p193 = por %p191, %p192
      %p194 = scmp.ne.s32.totalorder %s182, %s183
      %p195 = scmp.eq.s32.totalorder %s26, 1
      %p196 = por %p194, %p195
      %p198 = scmp.ne.s32.totalorder %s183, %s197
      %p199 = scmp.eq.s32.totalorder %s26, 0
      %p200 = por %p198, %p199
      %s202 = sadd.s32 %s201, 1
      %p205 = scmp.eq.s32.totalorder %s20, 1
      %p206 = scmp.ne.s32.totalorder %s201, %s203
      %p207 = scmp.eq.s32.totalorder %s20, 0
      %p208 = por %p206, %p207
      %p209 = scmp.ne.s32.totalorder %s201, %s203
      %p210 = scmp.eq.s32.totalorder %s25, 1
      %p211 = por %p209, %p210
      %p212 = scmp.ne.s32.totalorder %s203, %s204
      %p213 = scmp.eq.s32.totalorder %s25, 0
      %p214 = por %p212, %p213
      %p215 = scmp.ne.s32.totalorder %s203, %s204
      %p216 = scmp.eq.s32.totalorder %s26, 1
      %p217 = por %p215, %p216
      %p219 = scmp.ne.s32.totalorder %s204, %s218
      %p220 = scmp.eq.s32.totalorder %s26, 0
      %p221 = por %p219, %p220
      %s222 = ssub.s32 %s20, %s27
      %p223 = scmp.eq.s32.totalorder %s222, 0
      %s225 = sadd.s32 %s224, 1
      %s226 = scalar_select %p223, %s224, %s225
      %p229 = pneg %p223
      %p230 = scmp.eq.s32.totalorder %s20, 1
      %p231 = por %p229, %p230
      %p232 = scmp.ne.s32.totalorder %s224, %s227
      %p233 = scmp.eq.s32.totalorder %s20, 0
      %p234 = por %p232, %p233
      %p235 = scmp.ne.s32.totalorder %s224, %s227
      %p236 = scmp.eq.s32.totalorder %s25, 1
      %p237 = por %p235, %p236
      %p238 = scmp.ne.s32.totalorder %s227, %s228
      %p239 = scmp.eq.s32.totalorder %s25, 0
      %p240 = por %p238, %p239
      %p241 = scmp.ne.s32.totalorder %s227, %s228
      %p242 = scmp.eq.s32.totalorder %s26, 1
      %p243 = por %p241, %p242
      %p245 = scmp.ne.s32.totalorder %s228, %s244
      %p246 = scmp.eq.s32.totalorder %s26, 0
      %p247 = por %p245, %p246
      %p248 = scmp.le.s32.totalorder 1, %s20
      %p249 = scmp.lt.s32.totalorder %s20, 3
      %p250 = pnand %p248, %p249
      %p251 = pneg %p250
      // Predicated region
      $region9: #{tpu_custom_call.1} parent=5 // pred_check
        _
      $region10: #{tpu_custom_call.1} parent=5 // pred_check_branch
        %253 = sbr.rel (%p250) target = $region12
      $region11: #{tpu_custom_call.1} parent=5 // pred_region
        %s254 = ssub.s32 %s20, 1
        // Predicated region
        $region13: #{tpu_custom_call.1} parent=11 // pred_check
          %p255 = pneg %p67
        $region14: #{tpu_custom_call.1} parent=11 // pred_check_branch
          %257 = sbr.rel (%p255) target = $region16
        $region15: #{tpu_custom_call.1} parent=11 // pred_region
          %s259 = ssub.s32 3072, 3072
          %260 = vsyncadd [#allocation3], %s259
          %s261 = sshll.u32 [#allocation2], 4
          %s262 = int_to_ptr.vmem [resolvable:$true] %s261
          %267 = dma.hbm_to_vmem [thread:$0]  %s1, 3072, %s262, [#allocation3], 64, 64, 4
        $region16: #{tpu_custom_call.1} parent=11 // pred_fallthru
          _
        // Predicated region
        $region17: #{tpu_custom_call.1} parent=11 // pred_check
          %p268 = pneg %p88
        $region18: #{tpu_custom_call.1} parent=11 // pred_check_branch
          %270 = sbr.rel (%p268) target = $region20
        $region19: #{tpu_custom_call.1} parent=11 // pred_region
          _
        $region20: #{tpu_custom_call.1} parent=11 // pred_fallthru
          _
        // Predicated region
        $region21: #{tpu_custom_call.1} parent=11 // pred_check
          %p271 = pneg %p109
        $region22: #{tpu_custom_call.1} parent=11 // pred_check_branch
          %273 = sbr.rel (%p271) target = $region24
        $region23: #{tpu_custom_call.1} parent=11 // pred_region
          %s275 = ssub.s32 3072, 3072
          %276 = vsyncadd [#allocation6], %s275
          %s277 = sshll.u32 [#allocation5], 4
          %s278 = int_to_ptr.vmem [resolvable:$true] %s277
          %283 = dma.hbm_to_vmem [thread:$0]  %s3, 3072, %s278, [#allocation6], 64, 64, 4
        $region24: #{tpu_custom_call.1} parent=11 // pred_fallthru
          _
        // Predicated region
        $region25: #{tpu_custom_call.1} parent=11 // pred_check
          %p284 = pneg %p130
        $region26: #{tpu_custom_call.1} parent=11 // pred_check_branch
          %286 = sbr.rel (%p284) target = $region28
        $region27: #{tpu_custom_call.1} parent=11 // pred_region
          _
        $region28: #{tpu_custom_call.1} parent=11 // pred_fallthru
          _
        // Predicated region
        $region29: #{tpu_custom_call.1} parent=11 // pred_check
          %p287 = pneg %p151
        $region30: #{tpu_custom_call.1} parent=11 // pred_check_branch
          %289 = sbr.rel (%p287) target = $region32
        $region31: #{tpu_custom_call.1} parent=11 // pred_region
          %s291 = ssub.s32 3072, 3072
          %292 = vsyncadd [#allocation6], %s291
          %s293 = sshll.u32 [#allocation7], 4
          %s294 = int_to_ptr.vmem [resolvable:$true] %s293
          %299 = dma.hbm_to_vmem [thread:$0]  %s5, 3072, %s294, [#allocation6], 64, 64, 4
        $region32: #{tpu_custom_call.1} parent=11 // pred_fallthru
          _
        // Predicated region
        $region33: #{tpu_custom_call.1} parent=11 // pred_check
          %p300 = pneg %p172
        $region34: #{tpu_custom_call.1} parent=11 // pred_check_branch
          %302 = sbr.rel (%p300) target = $region36
        $region35: #{tpu_custom_call.1} parent=11 // pred_region
          _
        $region36: #{tpu_custom_call.1} parent=11 // pred_fallthru
          _
        // Predicated region
        $region37: #{tpu_custom_call.1} parent=11 // pred_check
          %p303 = pneg %p193
        $region38: #{tpu_custom_call.1} parent=11 // pred_check_branch
          %305 = sbr.rel (%p303) target = $region40
        $region39: #{tpu_custom_call.1} parent=11 // pred_region
          _
        $region40: #{tpu_custom_call.1} parent=11 // pred_fallthru
          _
        // Predicated region
        $region41: #{tpu_custom_call.1} parent=11 // pred_check
          %p306 = pneg %p214
        $region42: #{tpu_custom_call.1} parent=11 // pred_check_branch
          %308 = sbr.rel (%p306) target = $region44
        $region43: #{tpu_custom_call.1} parent=11 // pred_region
          _
        $region44: #{tpu_custom_call.1} parent=11 // pred_fallthru
          _
      $region12: #{tpu_custom_call.1} parent=5 // pred_fallthru
        _
      %p309 = scmp.lt.s32.totalorder %s20, 2
      // Predicated region
      $region45: #{tpu_custom_call.1} parent=5 // pred_check
        %p310 = pneg %p309
      $region46: #{tpu_custom_call.1} parent=5 // pred_check_branch
        %312 = sbr.rel (%p310) target = $region48
      $region47: #{tpu_custom_call.1} parent=5 // pred_region
        // Predicated region
        $region49: #{tpu_custom_call.1} parent=47 // pred_check
          %p313 = pneg %p40
        $region50: #{tpu_custom_call.1} parent=47 // pred_check_branch
          %315 = sbr.rel (%p313) target = $region52
        $region51: #{tpu_custom_call.1} parent=47 // pred_region
          %s316 = smul.u32 4, %s20
          %p317 = scmp.lt.s32.totalorder %s316, 7
          %s318 = scalar_select %p317, %s316, 7
          %s319 = smul.addr %s318, 4
          %s320 = scalar_lea.vmem %s0, %s319
          %s321 = smul.u32 4, %s20
        $region52: #{tpu_custom_call.1} parent=47 // pred_fallthru
          _
      $region48: #{tpu_custom_call.1} parent=5 // pred_fallthru
        _
      %p322 = scmp.le.s32.totalorder 1, %s20
      %p323 = scmp.lt.s32.totalorder %s20, 3
      %p324 = pnand %p322, %p323
      %p325 = pneg %p324
      // Predicated region
      $region53: #{tpu_custom_call.1} parent=5 // pred_check
        _
      $region54: #{tpu_custom_call.1} parent=5 // pred_check_branch
        %327 = sbr.rel (%p324) target = $region56
      $region55: #{tpu_custom_call.1} parent=5 // pred_region
        %s328 = ssub.s32 %s20, 1
        // Predicated region
        $region57: #{tpu_custom_call.1} parent=55 // pred_check
          %p329 = pneg %p67
        $region58: #{tpu_custom_call.1} parent=55 // pred_check_branch
          %331 = sbr.rel (%p329) target = $region60
        $region59: #{tpu_custom_call.1} parent=55 // pred_region
          %332 = dma.done [#allocation3], 3072
        $region60: #{tpu_custom_call.1} parent=55 // pred_fallthru
          _
        // Predicated region
        $region61: #{tpu_custom_call.1} parent=55 // pred_check
          %p333 = pneg %p109
        $region62: #{tpu_custom_call.1} parent=55 // pred_check_branch
          %335 = sbr.rel (%p333) target = $region64
        $region63: #{tpu_custom_call.1} parent=55 // pred_region
          %336 = dma.done [#allocation6], 3072
        $region64: #{tpu_custom_call.1} parent=55 // pred_fallthru
          _
        // Predicated region
        $region65: #{tpu_custom_call.1} parent=55 // pred_check
          %p337 = pneg %p151
        $region66: #{tpu_custom_call.1} parent=55 // pred_check_branch
          %339 = sbr.rel (%p337) target = $region68
        $region67: #{tpu_custom_call.1} parent=55 // pred_region
          %340 = dma.done [#allocation6], 3072
        $region68: #{tpu_custom_call.1} parent=55 // pred_fallthru
          _
        %s341 = smul.u32 4, %s25
        %p342 = scmp.lt.s32.totalorder %s341, 7
        %s343 = scalar_select %p342, %s341, 7
        %s344 = smul.addr %s343, 4
        %s345 = scalar_lea.vmem %s0, %s344
        %p346 = pneg %p46
        %p347 = pneg %p43
        %p348 = pneg %p67
        %p349 = pneg %p64
        %p350 = pneg %p88
        %p351 = pneg %p85
        %p352 = pneg %p109
        %p353 = pneg %p106
        %p354 = pneg %p130
        %p355 = pneg %p127
        %p356 = pneg %p151
        %p357 = pneg %p148
        %p358 = pneg %p172
        %p359 = pneg %p169
        %p360 = pneg %p193
        %p361 = pneg %p190
        %p362 = pneg %p214
        %p363 = pneg %p211
        %p364 = pneg %p240
        %p365 = pneg %p237
        %s366 = sand.u32 %s227, 1
        %s367 = scalar_lea.sflag [#allocation4], %s366
        %s368 = sand.u32 %s227, 1
        %s369 = smul.addr %s368, 32
        %s370 = scalar_lea.vmem [#allocation8], %s369
        %s371 = smul.u32 4, %s25
        %p372 = scmp.lt.s32.totalorder %s371, 7
        %s373 = scalar_select %p372, %s371, 7
        %s374 = smul.addr %s373, 4
        %s375 = scalar_lea.vmem %s0, %s374
        %s376 = smul.u32 4, %s25
        %s377 = smul.u32 4, %s25
        %v381 = vld [vmem:[%s375] sm:$0xf]
        %v382 = vld [vmem:[%s375 + $0x4] sm:$0xf]
        %v383 = vld [vmem:[%s375 + $0x8] sm:$0xf]
        %v384 = vld [vmem:[%s375 + $0xc] sm:$0xf]
        %v385 = vunpack.c.l.bf16 %v381
        %v386 = vunpack.c.l.bf16 %v382
        %v387 = vunpack.c.l.bf16 %v383
        %v388 = vunpack.c.l.bf16 %v384
        %v389 = vld [vmem:[%s7] sm:$0xff]
        %vm390 = vcmask 261120
        %v392 = vsel %vm390, %v389, 0
        %394 = vmatprep.subr.mxu0 0.0
        %395 = vmatpush1.msra.mxu0 %v385
        %396 = vmatprep.subr.mxu0 0.0
        %397 = vmatpush1.msra.mxu0 %v386
        %398 = vmatprep.subr.mxu0 0.0
        %399 = vmatpush1.msra.mxu0 %v387
        %400 = vmatprep.subr.mxu0 0.0
        %401 = vmatpush1.msra.mxu0 %v388
        %402 = vmatprep.subr.mxu0 0.0
        %403 = vmatpush1.msra.mxu0 0.0
        %404 = vmatprep.subr.mxu0 0.0
        %405 = vmatpush1.msra.mxu0 0.0
        %406 = vmatprep.subr.mxu0 0.0
        %407 = vmatpush1.msra.mxu0 0.0
        %408 = vmatprep.subr.mxu0 0.0
        %409 = vmatpush1.msra.mxu0 0.0
        %410 = vmatprep.subr.mxu0 0.0
        %411 = vmatpush1.msra.mxu0 0.0
        %412 = vmatprep.subr.mxu0 0.0
        %413 = vmatpush1.msra.mxu0 0.0
        %414 = vmatprep.subr.mxu0 0.0
        %415 = vmatpush1.msra.mxu0 0.0
        %416 = vmatprep.subr.mxu0 0.0
        %417 = vmatpush1.msra.mxu0 0.0
        %418 = vmatprep.subr.mxu0 0.0
        %419 = vmatpush1.msra.mxu0 0.0
        %420 = vmatprep.subr.mxu0 0.0
        %421 = vmatpush1.msra.mxu0 0.0
        %422 = vmatprep.subr.mxu0 0.0
        %423 = vmatpush1.msra.mxu0 0.0
        %424 = vmatprep.subr.mxu0 0.0
        %425 = vmatpush1.msra.mxu0 0.0
        %426 = vmatprep.subr.mxu0 0.0
        %427 = vmatpush1.msra.mxu0 0.0
        %428 = vmatprep.subr.mxu0 0.0
        %429 = vmatpush1.msra.mxu0 0.0
        %430 = vmatprep.subr.mxu0 0.0
        %431 = vmatpush1.msra.mxu0 0.0
        %432 = vmatprep.subr.mxu0 0.0
        %433 = vmatpush1.msra.mxu0 0.0
        %434 = vmatprep.subr.mxu0 0.0
        %435 = vmatpush1.msra.mxu0 0.0
        %436 = vmatprep.subr.mxu0 0.0
        %437 = vmatpush1.msra.mxu0 0.0
        %438 = vmatprep.subr.mxu0 0.0
        %439 = vmatpush1.msra.mxu0 0.0
        %440 = vmatprep.subr.mxu0 0.0
        %441 = vmatpush1.msra.mxu0 0.0
        %442 = vmatprep.subr.mxu0 0.0
        %443 = vmatpush1.msra.mxu0 0.0
        %444 = vmatprep.subr.mxu0 0.0
        %445 = vmatpush1.msra.mxu0 0.0
        %446 = vmatprep.subr.mxu0 0.0
        %447 = vmatpush1.msra.mxu0 0.0
        %448 = vmatprep.subr.mxu0 0.0
        %449 = vmatpush1.msra.mxu0 0.0
        %450 = vmatprep.subr.mxu0 0.0
        %451 = vmatpush1.msra.mxu0 0.0
        %452 = vmatprep.subr.mxu0 0.0
        %453 = vmatpush1.msra.mxu0 0.0
        %454 = vmatprep.subr.mxu0 0.0
        %455 = vmatpush1.msra.mxu0 0.0
        %456 = vmatprep.subr.mxu0 0.0
        %457 = vmatpush1.msra.mxu0 0.0
        %458 = vmatprep.mubr.f32.mxu0 0.0
        %459 = vmatmul.mubr.f32.gmra.mrb[0].mxu0 %v392
        %v460 = vpop.f32.mrb[0].mxu0
        %v461 = vadd.f32 0.0, %v460
        %v462 = vpop.f32.mrb[0].mxu0
        %463 = vdwg.mxu0
        %v464 = vpack.c.bf16 %v461, %v461
        %v465 = vlaneseq
        %v466 = vshrl.u32 %v465, 7
        %vm467 = vcmp.lt.s32.totalorder %v466, 0
        %v468 = vsub.s32 0, %v466
        %v469 = vsel %vm467, %v468, %v466
        %v470 = vshrl.u32 %v469, 2
        %v471 = vand.u32 %v469, 3
        %v472 = vsub.s32 0, %v471
        %v473 = vsel %vm467, %v472, %v471
        %vm474 = vcmp.ne.s32.totalorder %v473, 0
        %vm475 = vcmp.lt.s32.totalorder %v473, 0
        %vm476 = vmand %vm475, %vm474
        %v477 = vadd.s32 %v473, 4
        %v478 = vsel %vm476, %v477, %v473
        %v480 = vshrl.u32 %v464, 16
        %v482 = vrot.slane %v480, 7
        %v483 = vshll.u32 %v464, 16
        %v485 = vor.u32 %v482, %v483
        %vm487 = vcmask 1040384
        %vm488 = vsmask.f32 256
        %vm489 = vmand %vm487, %vm488
        %v490 = vsel %vm489, 0, %v485
        %vm491 = vcmp.ge.s32.totalorder %v478, 1
        %vm492 = vmpackc.low %vm491, %vm491
        %v493 = vsel %vm492, %v490, 0
        %v494 = vld [vmem:[#allocation2] sm:$0xf]
        %v495 = vld [vmem:[#allocation2 + $0x4] sm:$0xf]
        %v496 = vld [vmem:[#allocation2 + $0x8] sm:$0xf]
        %v497 = vld [vmem:[#allocation2 + $0xc] sm:$0xf]
        %v498 = vld [vmem:[#allocation2 + $0x10] sm:$0xf]
        %v499 = vld [vmem:[#allocation2 + $0x14] sm:$0xf]
        %v500 = vld [vmem:[#allocation2 + $0x18] sm:$0xf]
        %v501 = vld [vmem:[#allocation2 + $0x1c] sm:$0xf]
        %v502 = vld [vmem:[#allocation2 + $0x20] sm:$0xf]
        %v503 = vld [vmem:[#allocation2 + $0x24] sm:$0xf]
        %v504 = vld [vmem:[#allocation2 + $0x28] sm:$0xf]
        %v505 = vld [vmem:[#allocation2 + $0x2c] sm:$0xf]
        %v506 = vld [vmem:[#allocation2 + $0x30] sm:$0xf]
        %v507 = vld [vmem:[#allocation2 + $0x34] sm:$0xf]
        %v508 = vld [vmem:[#allocation2 + $0x38] sm:$0xf]
        %v509 = vld [vmem:[#allocation2 + $0x3c] sm:$0xf]
        %s510 = scalar_lea.vmem [#allocation2], 64
        %v511 = vld [vmem:[%s510] sm:$0xf]
        %v512 = vld [vmem:[%s510 + $0x4] sm:$0xf]
        %v513 = vld [vmem:[%s510 + $0x8] sm:$0xf]
        %v514 = vld [vmem:[%s510 + $0xc] sm:$0xf]
        %v515 = vld [vmem:[%s510 + $0x10] sm:$0xf]
        %v516 = vld [vmem:[%s510 + $0x14] sm:$0xf]
        %v517 = vld [vmem:[%s510 + $0x18] sm:$0xf]
        %v518 = vld [vmem:[%s510 + $0x1c] sm:$0xf]
        %v519 = vld [vmem:[%s510 + $0x20] sm:$0xf]
        %v520 = vld [vmem:[%s510 + $0x24] sm:$0xf]
        %v521 = vld [vmem:[%s510 + $0x28] sm:$0xf]
        %v522 = vld [vmem:[%s510 + $0x2c] sm:$0xf]
        %v523 = vld [vmem:[%s510 + $0x30] sm:$0xf]
        %v524 = vld [vmem:[%s510 + $0x34] sm:$0xf]
        %v525 = vld [vmem:[%s510 + $0x38] sm:$0xf]
        %v526 = vld [vmem:[%s510 + $0x3c] sm:$0xf]
        %v543 = vunpack.c.l.b16 %v511
        %v544 = vunpack.c.l.b16 %v512
        %v545 = vunpack.c.l.b16 %v513
        %v546 = vunpack.c.l.b16 %v514
        %v547 = vunpack.c.l.b16 %v515
        %v548 = vunpack.c.l.b16 %v516
        %v549 = vunpack.c.l.b16 %v517
        %v550 = vunpack.c.l.b16 %v518
        %v551 = vunpack.c.l.b16 %v519
        %v552 = vunpack.c.l.b16 %v520
        %v553 = vunpack.c.l.b16 %v521
        %v554 = vunpack.c.l.b16 %v522
        %v555 = vunpack.c.l.b16 %v523
        %v556 = vunpack.c.l.b16 %v524
        %v557 = vunpack.c.l.b16 %v525
        %v558 = vunpack.c.l.b16 %v526
        %v559 = vpack.c.b16 %v544, %v543
        %v560 = vpack.c.b16 %v546, %v545
        %v561 = vpack.c.b16 %v548, %v547
        %v562 = vpack.c.b16 %v550, %v549
        %v563 = vpack.c.b16 %v552, %v551
        %v564 = vpack.c.b16 %v554, %v553
        %v565 = vpack.c.b16 %v556, %v555
        %v566 = vpack.c.b16 %v558, %v557
        %575 = vmatprep.subr.bf16.mxu0 0
        %576 = vmatpush1.bf16.msra.mxu0 %v559
        %577 = vmatprep.subr.bf16.mxu0 0
        %578 = vmatpush1.bf16.msra.mxu0 %v560
        %579 = vmatprep.subr.bf16.mxu0 0
        %580 = vmatpush1.bf16.msra.mxu0 %v561
        %581 = vmatprep.subr.bf16.mxu0 0
        %582 = vmatpush1.bf16.msra.mxu0 %v562
        %583 = vmatprep.subr.bf16.mxu0 0
        %584 = vmatpush1.bf16.msra.mxu0 %v563
        %585 = vmatprep.subr.bf16.mxu0 0
        %586 = vmatpush1.bf16.msra.mxu0 %v564
        %587 = vmatprep.subr.bf16.mxu0 0
        %588 = vmatpush1.bf16.msra.mxu0 %v565
        %589 = vmatprep.subr.bf16.mxu0 0
        %590 = vmatpush1.bf16.msra.mxu0 %v566
        %591 = vmatprep.subr.bf16.mxu0 0
        %592 = vmatpush1.bf16.msra.mxu0 0
        %593 = vmatprep.subr.bf16.mxu0 0
        %594 = vmatpush1.bf16.msra.mxu0 0
        %595 = vmatprep.subr.bf16.mxu0 0
        %596 = vmatpush1.bf16.msra.mxu0 0
        %597 = vmatprep.subr.bf16.mxu0 0
        %598 = vmatpush1.bf16.msra.mxu0 0
        %599 = vmatprep.subr.bf16.mxu0 0
        %600 = vmatpush1.bf16.msra.mxu0 0
        %601 = vmatprep.subr.bf16.mxu0 0
        %602 = vmatpush1.bf16.msra.mxu0 0
        %603 = vmatprep.subr.bf16.mxu0 0
        %604 = vmatpush1.bf16.msra.mxu0 0
        %605 = vmatprep.subr.bf16.mxu0 0
        %606 = vmatpush1.bf16.msra.mxu0 0
        %607 = vmatprep.mubr.bf16.mxu0 0
        %608 = vmatmul.mubr.bf16.gmra.mrb[0].mxu0 %v464
        %v609 = vpop.f32.mrb[0].mxu0
        %v610 = vadd.f32 0.0, %v609
        %v611 = vpop.f32.mrb[0].mxu0
        %v612 = vpop.f32.mrb[0].mxu0
        %v613 = vpop.f32.mrb[0].mxu0
        %614 = vdwg.mxu0
        %v631 = vunpack.c.l.b16 %v494
        %v632 = vunpack.c.l.b16 %v495
        %v633 = vunpack.c.l.b16 %v496
        %v634 = vunpack.c.l.b16 %v497
        %v635 = vunpack.c.l.b16 %v498
        %v636 = vunpack.c.l.b16 %v499
        %v637 = vunpack.c.l.b16 %v500
        %v638 = vunpack.c.l.b16 %v501
        %v639 = vunpack.c.l.b16 %v502
        %v640 = vunpack.c.l.b16 %v503
        %v641 = vunpack.c.l.b16 %v504
        %v642 = vunpack.c.l.b16 %v505
        %v643 = vunpack.c.l.b16 %v506
        %v644 = vunpack.c.l.b16 %v507
        %v645 = vunpack.c.l.b16 %v508
        %v646 = vunpack.c.l.b16 %v509
        %v647 = vpack.c.b16 %v632, %v631
        %v648 = vpack.c.b16 %v634, %v633
        %v649 = vpack.c.b16 %v636, %v635
        %v650 = vpack.c.b16 %v638, %v637
        %v651 = vpack.c.b16 %v640, %v639
        %v652 = vpack.c.b16 %v642, %v641
        %v653 = vpack.c.b16 %v644, %v643
        %v654 = vpack.c.b16 %v646, %v645
        %663 = vmatprep.subr.bf16.mxu0 0
        %664 = vmatpush1.bf16.msra.mxu0 %v647
        %665 = vmatprep.subr.bf16.mxu0 0
        %666 = vmatpush1.bf16.msra.mxu0 %v648
        %667 = vmatprep.subr.bf16.mxu0 0
        %668 = vmatpush1.bf16.msra.mxu0 %v649
        %669 = vmatprep.subr.bf16.mxu0 0
        %670 = vmatpush1.bf16.msra.mxu0 %v650
        %671 = vmatprep.subr.bf16.mxu0 0
        %672 = vmatpush1.bf16.msra.mxu0 %v651
        %673 = vmatprep.subr.bf16.mxu0 0
        %674 = vmatpush1.bf16.msra.mxu0 %v652
        %675 = vmatprep.subr.bf16.mxu0 0
        %676 = vmatpush1.bf16.msra.mxu0 %v653
        %677 = vmatprep.subr.bf16.mxu0 0
        %678 = vmatpush1.bf16.msra.mxu0 %v654
        %679 = vmatprep.subr.bf16.mxu0 0
        %680 = vmatpush1.bf16.msra.mxu0 0
        %681 = vmatprep.subr.bf16.mxu0 0
        %682 = vmatpush1.bf16.msra.mxu0 0
        %683 = vmatprep.subr.bf16.mxu0 0
        %684 = vmatpush1.bf16.msra.mxu0 0
        %685 = vmatprep.subr.bf16.mxu0 0
        %686 = vmatpush1.bf16.msra.mxu0 0
        %687 = vmatprep.subr.bf16.mxu0 0
        %688 = vmatpush1.bf16.msra.mxu0 0
        %689 = vmatprep.subr.bf16.mxu0 0
        %690 = vmatpush1.bf16.msra.mxu0 0
        %691 = vmatprep.subr.bf16.mxu0 0
        %692 = vmatpush1.bf16.msra.mxu0 0
        %693 = vmatprep.subr.bf16.mxu0 0
        %694 = vmatpush1.bf16.msra.mxu0 0
        %695 = vmatprep.mubr.bf16.mxu0 0
        %696 = vmatmul.mubr.bf16.gmra.mrb[0].mxu0 %v493
        %v697 = vpop.f32.mrb[0].mxu0
        %v698 = vadd.f32 %v610, %v697
        %v699 = vpop.f32.mrb[0].mxu0
        %v700 = vpop.f32.mrb[0].mxu0
        %v701 = vpop.f32.mrb[0].mxu0
        %702 = vdwg.mxu0
        %v703 = vrot.slane %v483, 1
        %v704 = vor.u32 %v480, %v703
        %vm706 = vcmask 1043456
        %vm707 = vsmask.f32 3328
        %vm708 = vmand %vm706, %vm707
        %v709 = vsel %vm708, %v704, 0
        %vm710 = vcmp.lt.s32.totalorder %v478, 3
        %vm711 = vmpackc.low %vm710, %vm710
        %v712 = vsel %vm711, %v709, 0
        %s713 = scalar_lea.vmem [#allocation2], 128
        %v714 = vld [vmem:[%s713] sm:$0xf]
        %v715 = vld [vmem:[%s713 + $0x4] sm:$0xf]
        %v716 = vld [vmem:[%s713 + $0x8] sm:$0xf]
        %v717 = vld [vmem:[%s713 + $0xc] sm:$0xf]
        %v718 = vld [vmem:[%s713 + $0x10] sm:$0xf]
        %v719 = vld [vmem:[%s713 + $0x14] sm:$0xf]
        %v720 = vld [vmem:[%s713 + $0x18] sm:$0xf]
        %v721 = vld [vmem:[%s713 + $0x1c] sm:$0xf]
        %v722 = vld [vmem:[%s713 + $0x20] sm:$0xf]
        %v723 = vld [vmem:[%s713 + $0x24] sm:$0xf]
        %v724 = vld [vmem:[%s713 + $0x28] sm:$0xf]
        %v725 = vld [vmem:[%s713 + $0x2c] sm:$0xf]
        %v726 = vld [vmem:[%s713 + $0x30] sm:$0xf]
        %v727 = vld [vmem:[%s713 + $0x34] sm:$0xf]
        %v728 = vld [vmem:[%s713 + $0x38] sm:$0xf]
        %v729 = vld [vmem:[%s713 + $0x3c] sm:$0xf]
        %v746 = vunpack.c.l.b16 %v714
        %v747 = vunpack.c.l.b16 %v715
        %v748 = vunpack.c.l.b16 %v716
        %v749 = vunpack.c.l.b16 %v717
        %v750 = vunpack.c.l.b16 %v718
        %v751 = vunpack.c.l.b16 %v719
        %v752 = vunpack.c.l.b16 %v720
        %v753 = vunpack.c.l.b16 %v721
        %v754 = vunpack.c.l.b16 %v722
        %v755 = vunpack.c.l.b16 %v723
        %v756 = vunpack.c.l.b16 %v724
        %v757 = vunpack.c.l.b16 %v725
        %v758 = vunpack.c.l.b16 %v726
        %v759 = vunpack.c.l.b16 %v727
        %v760 = vunpack.c.l.b16 %v728
        %v761 = vunpack.c.l.b16 %v729
        %v762 = vpack.c.b16 %v747, %v746
        %v763 = vpack.c.b16 %v749, %v748
        %v764 = vpack.c.b16 %v751, %v750
        %v765 = vpack.c.b16 %v753, %v752
        %v766 = vpack.c.b16 %v755, %v754
        %v767 = vpack.c.b16 %v757, %v756
        %v768 = vpack.c.b16 %v759, %v758
        %v769 = vpack.c.b16 %v761, %v760
        %778 = vmatprep.subr.bf16.mxu0 0
        %779 = vmatpush1.bf16.msra.mxu0 %v762
        %780 = vmatprep.subr.bf16.mxu0 0
        %781 = vmatpush1.bf16.msra.mxu0 %v763
        %782 = vmatprep.subr.bf16.mxu0 0
        %783 = vmatpush1.bf16.msra.mxu0 %v764
        %784 = vmatprep.subr.bf16.mxu0 0
        %785 = vmatpush1.bf16.msra.mxu0 %v765
        %786 = vmatprep.subr.bf16.mxu0 0
        %787 = vmatpush1.bf16.msra.mxu0 %v766
        %788 = vmatprep.subr.bf16.mxu0 0
        %789 = vmatpush1.bf16.msra.mxu0 %v767
        %790 = vmatprep.subr.bf16.mxu0 0
        %791 = vmatpush1.bf16.msra.mxu0 %v768
        %792 = vmatprep.subr.bf16.mxu0 0
        %793 = vmatpush1.bf16.msra.mxu0 %v769
        %794 = vmatprep.subr.bf16.mxu0 0
        %795 = vmatpush1.bf16.msra.mxu0 0
        %796 = vmatprep.subr.bf16.mxu0 0
        %797 = vmatpush1.bf16.msra.mxu0 0
        %798 = vmatprep.subr.bf16.mxu0 0
        %799 = vmatpush1.bf16.msra.mxu0 0
        %800 = vmatprep.subr.bf16.mxu0 0
        %801 = vmatpush1.bf16.msra.mxu0 0
        %802 = vmatprep.subr.bf16.mxu0 0
        %803 = vmatpush1.bf16.msra.mxu0 0
        %804 = vmatprep.subr.bf16.mxu0 0
        %805 = vmatpush1.bf16.msra.mxu0 0
        %806 = vmatprep.subr.bf16.mxu0 0
        %807 = vmatpush1.bf16.msra.mxu0 0
        %808 = vmatprep.subr.bf16.mxu0 0
        %809 = vmatpush1.bf16.msra.mxu0 0
        %810 = vmatprep.mubr.bf16.mxu0 0
        %811 = vmatmul.mubr.bf16.gmra.mrb[0].mxu0 %v712
        %v812 = vpop.f32.mrb[0].mxu0
        %v813 = vadd.f32 0.0, %v812
        %v814 = vpop.f32.mrb[0].mxu0
        %v815 = vpop.f32.mrb[0].mxu0
        %v816 = vpop.f32.mrb[0].mxu0
        %817 = vdwg.mxu0
        %v818 = vadd.f32 %v698, %v813
        %v819 = vld [vmem:[%s2] sm:$0x1]
        %v821 = vlaneseq
        %v822 = vshrl.u32 %v821, 7
        %v823 = vsub.s32 0, %v822
        %v824 = vrot.slane %v819, %v823
        %v826 = vadd.f32 %v818, %v824
        %v827 = vld [vmem:[%s8] sm:$0xff]
        %v828 = vld [vmem:[%s8 + $0x8] sm:$0xff]
        %v829 = vld [vmem:[%s8 + $0x10] sm:$0xff]
        %v830 = vld [vmem:[%s8 + $0x18] sm:$0xff]
        %vm831 = vcmask 64512
        %v833 = vsel %vm831, %v827, 0
        %v836 = vsel %vm831, %v828, 0
        %v839 = vsel %vm831, %v829, 0
        %v842 = vsel %vm831, %v830, 0
        %844 = vmatprep.subr.mxu0 0.0
        %845 = vmatpush1.msra.mxu0 %v826
        %846 = vmatprep.subr.mxu0 0.0
        %847 = vmatpush1.msra.mxu0 0.0
        %848 = vmatprep.subr.mxu0 0.0
        %849 = vmatpush1.msra.mxu0 0.0
        %850 = vmatprep.subr.mxu0 0.0
        %851 = vmatpush1.msra.mxu0 0.0
        %852 = vmatprep.subr.mxu0 0.0
        %853 = vmatpush1.msra.mxu0 0.0
        %854 = vmatprep.subr.mxu0 0.0
        %855 = vmatpush1.msra.mxu0 0.0
        %856 = vmatprep.subr.mxu0 0.0
        %857 = vmatpush1.msra.mxu0 0.0
        %858 = vmatprep.subr.mxu0 0.0
        %859 = vmatpush1.msra.mxu0 0.0
        %860 = vmatprep.subr.mxu0 0.0
        %861 = vmatpush1.msra.mxu0 0.0
        %862 = vmatprep.subr.mxu0 0.0
        %863 = vmatpush1.msra.mxu0 0.0
        %864 = vmatprep.subr.mxu0 0.0
        %865 = vmatpush1.msra.mxu0 0.0
        %866 = vmatprep.subr.mxu0 0.0
        %867 = vmatpush1.msra.mxu0 0.0
        %868 = vmatprep.subr.mxu0 0.0
        %869 = vmatpush1.msra.mxu0 0.0
        %870 = vmatprep.subr.mxu0 0.0
        %871 = vmatpush1.msra.mxu0 0.0
        %872 = vmatprep.subr.mxu0 0.0
        %873 = vmatpush1.msra.mxu0 0.0
        %874 = vmatprep.subr.mxu0 0.0
        %875 = vmatpush1.msra.mxu0 0.0
        %876 = vmatprep.subr.mxu0 0.0
        %877 = vmatpush1.msra.mxu0 0.0
        %878 = vmatprep.subr.mxu0 0.0
        %879 = vmatpush1.msra.mxu0 0.0
        %880 = vmatprep.subr.mxu0 0.0
        %881 = vmatpush1.msra.mxu0 0.0
        %882 = vmatprep.subr.mxu0 0.0
        %883 = vmatpush1.msra.mxu0 0.0
        %884 = vmatprep.subr.mxu0 0.0
        %885 = vmatpush1.msra.mxu0 0.0
        %886 = vmatprep.subr.mxu0 0.0
        %887 = vmatpush1.msra.mxu0 0.0
        %888 = vmatprep.subr.mxu0 0.0
        %889 = vmatpush1.msra.mxu0 0.0
        %890 = vmatprep.subr.mxu0 0.0
        %891 = vmatpush1.msra.mxu0 0.0
        %892 = vmatprep.subr.mxu0 0.0
        %893 = vmatpush1.msra.mxu0 0.0
        %894 = vmatprep.subr.mxu0 0.0
        %895 = vmatpush1.msra.mxu0 0.0
        %896 = vmatprep.subr.mxu0 0.0
        %897 = vmatpush1.msra.mxu0 0.0
        %898 = vmatprep.subr.mxu0 0.0
        %899 = vmatpush1.msra.mxu0 0.0
        %900 = vmatprep.subr.mxu0 0.0
        %901 = vmatpush1.msra.mxu0 0.0
        %902 = vmatprep.subr.mxu0 0.0
        %903 = vmatpush1.msra.mxu0 0.0
        %904 = vmatprep.subr.mxu0 0.0
        %905 = vmatpush1.msra.mxu0 0.0
        %906 = vmatprep.subr.mxu0 0.0
        %907 = vmatpush1.msra.mxu0 0.0
        %908 = vmatprep.mubr.f32.mxu0 0.0
        %909 = vmatmul.mubr.f32.gmra.mrb[0].mxu0 %v833
        %v910 = vpop.f32.mrb[0].mxu0
        %v911 = vadd.f32 0.0, %v910
        %v912 = vpop.f32.mrb[0].mxu0
        %913 = vmatprep.mubr.f32.mxu0 0.0
        %914 = vmatmul.mubr.f32.gmra.mrb[0].mxu0 %v836
        %v915 = vpop.f32.mrb[0].mxu0
        %v916 = vadd.f32 0.0, %v915
        %v917 = vpop.f32.mrb[0].mxu0
        %918 = vmatprep.mubr.f32.mxu0 0.0
        %919 = vmatmul.mubr.f32.gmra.mrb[0].mxu0 %v839
        %v920 = vpop.f32.mrb[0].mxu0
        %v921 = vadd.f32 0.0, %v920
        %v922 = vpop.f32.mrb[0].mxu0
        %923 = vmatprep.mubr.f32.mxu0 0.0
        %924 = vmatmul.mubr.f32.gmra.mrb[0].mxu0 %v842
        %v925 = vpop.f32.mrb[0].mxu0
        %v926 = vadd.f32 0.0, %v925
        %v927 = vpop.f32.mrb[0].mxu0
        %928 = vdwg.mxu0
        %v929 = vadd.s32 %v466, 8
        %v930 = vadd.s32 %v466, 16
        %v931 = vadd.s32 %v466, 24
        %vm932 = vcmp.lt.s32.totalorder %v466, 0
        %v933 = vsub.s32 0, %v466
        %v934 = vsel %vm932, %v933, %v466
        %v935 = vshrl.u32 %v934, 4
        %v936 = vand.u32 %v934, 15
        %v937 = vsub.s32 0, %v936
        %v938 = vsel %vm932, %v937, %v936
        %vm939 = vcmp.lt.s32.totalorder %v929, 0
        %v940 = vsub.s32 0, %v929
        %v941 = vsel %vm939, %v940, %v929
        %v942 = vshrl.u32 %v941, 4
        %v943 = vand.u32 %v941, 15
        %v944 = vsub.s32 0, %v943
        %v945 = vsel %vm939, %v944, %v943
        %vm946 = vcmp.lt.s32.totalorder %v930, 0
        %v947 = vsub.s32 0, %v930
        %v948 = vsel %vm946, %v947, %v930
        %v949 = vshrl.u32 %v948, 4
        %v950 = vand.u32 %v948, 15
        %v951 = vsub.s32 0, %v950
        %v952 = vsel %vm946, %v951, %v950
        %vm953 = vcmp.lt.s32.totalorder %v931, 0
        %v954 = vsub.s32 0, %v931
        %v955 = vsel %vm953, %v954, %v931
        %v956 = vshrl.u32 %v955, 4
        %v957 = vand.u32 %v955, 15
        %v958 = vsub.s32 0, %v957
        %v959 = vsel %vm953, %v958, %v957
        %vm960 = vcmp.ne.s32.totalorder %v938, 0
        %vm961 = vcmp.ne.s32.totalorder %v945, 0
        %vm962 = vcmp.ne.s32.totalorder %v952, 0
        %vm963 = vcmp.ne.s32.totalorder %v959, 0
        %vm964 = vcmp.lt.s32.totalorder %v938, 0
        %vm965 = vcmp.lt.s32.totalorder %v945, 0
        %vm966 = vcmp.lt.s32.totalorder %v952, 0
        %vm967 = vcmp.lt.s32.totalorder %v959, 0
        %vm968 = vmand %vm964, %vm960
        %vm969 = vmand %vm965, %vm961
        %vm970 = vmand %vm966, %vm962
        %vm971 = vmand %vm967, %vm963
        %v972 = vadd.s32 %v938, 16
        %v973 = vadd.s32 %v945, 16
        %v974 = vadd.s32 %v952, 16
        %v975 = vadd.s32 %v959, 16
        %v976 = vsel %vm968, %v972, %v938
        %v977 = vsel %vm969, %v973, %v945
        %v978 = vsel %vm970, %v974, %v952
        %v979 = vsel %vm971, %v975, %v959
        %v984 = vunpack.c.l.b16 %v381
        %v985 = vunpack.c.l.b16 %v382
        %v986 = vunpack.c.l.b16 %v383
        %v987 = vunpack.c.l.b16 %v384
        %v988 = vpack.c.b16 %v985, %v984
        %v989 = vpack.c.b16 %v987, %v986
        %v991 = vshrl.u32 %v988, 16
        %v993 = vrot.slane %v991, 7
        %v994 = vshll.u32 %v988, 16
        %v996 = vor.u32 %v993, %v994
        %v998 = vshrl.u32 %v989, 16
        %v1000 = vrot.slane %v998, 7
        %v1001 = vshll.u32 %v989, 16
        %v1003 = vor.u32 %v1000, %v1001
        %v1004 = vsel %vm488, %v993, %v1003
        %v1007 = vsel %vm489, 0, %v996
        %vm1008 = vcmp.ge.s32.totalorder %v976, 1
        %vm1009 = vcmp.ge.s32.totalorder %v977, 1
        %vm1010 = vcmp.ge.s32.totalorder %v978, 1
        %vm1011 = vcmp.ge.s32.totalorder %v979, 1
        %vm1012 = vmpackc.low %vm1008, %vm1008
        %vm1013 = vmpackc.low %vm1009, %vm1009
        %vm1014 = vmpackc.low %vm1010, %vm1010
        %vm1015 = vmpackc.low %vm1011, %vm1011
        %v1016 = vsel %vm1012, 65537, 0
        %v1017 = vsel %vm1013, 65537, 0
        %v1018 = vsel %vm1014, 65537, 0
        %v1019 = vsel %vm1015, 65537, 0
        %v1020 = vunpack.c.l.b16 %v1016
        %v1021 = vunpack.c.l.b16 %v1017
        %v1022 = vunpack.c.l.b16 %v1018
        %v1023 = vunpack.c.l.b16 %v1019
        %v1024 = vpack.c.b16 %v1021, %v1020
        %v1025 = vpack.c.b16 %v1023, %v1022
        %vm1026 = vcmp.ne.s16.totalorder %v1024, 0
        %vm1027 = vcmp.ne.s16.totalorder %v1025, 0
        %v1028 = vsel %vm1026, %v1007, 0
        %v1029 = vsel %vm1027, %v1004, 0
        %v1030 = vld [vmem:[#allocation5] sm:$0xf]
        %v1031 = vld [vmem:[#allocation5 + $0x4] sm:$0xf]
        %v1032 = vld [vmem:[#allocation5 + $0x8] sm:$0xf]
        %v1033 = vld [vmem:[#allocation5 + $0xc] sm:$0xf]
        %v1034 = vld [vmem:[#allocation5 + $0x10] sm:$0xf]
        %v1035 = vld [vmem:[#allocation5 + $0x14] sm:$0xf]
        %v1036 = vld [vmem:[#allocation5 + $0x18] sm:$0xf]
        %v1037 = vld [vmem:[#allocation5 + $0x1c] sm:$0xf]
        %v1038 = vld [vmem:[#allocation5 + $0x20] sm:$0xf]
        %v1039 = vld [vmem:[#allocation5 + $0x24] sm:$0xf]
        %v1040 = vld [vmem:[#allocation5 + $0x28] sm:$0xf]
        %v1041 = vld [vmem:[#allocation5 + $0x2c] sm:$0xf]
        %v1042 = vld [vmem:[#allocation5 + $0x30] sm:$0xf]
        %v1043 = vld [vmem:[#allocation5 + $0x34] sm:$0xf]
        %v1044 = vld [vmem:[#allocation5 + $0x38] sm:$0xf]
        %v1045 = vld [vmem:[#allocation5 + $0x3c] sm:$0xf]
        %s1046 = scalar_lea.vmem [#allocation5], 64
        %v1047 = vld [vmem:[%s1046] sm:$0xf]
        %v1048 = vld [vmem:[%s1046 + $0x4] sm:$0xf]
        %v1049 = vld [vmem:[%s1046 + $0x8] sm:$0xf]
        %v1050 = vld [vmem:[%s1046 + $0xc] sm:$0xf]
        %v1051 = vld [vmem:[%s1046 + $0x10] sm:$0xf]
        %v1052 = vld [vmem:[%s1046 + $0x14] sm:$0xf]
        %v1053 = vld [vmem:[%s1046 + $0x18] sm:$0xf]
        %v1054 = vld [vmem:[%s1046 + $0x1c] sm:$0xf]
        %v1055 = vld [vmem:[%s1046 + $0x20] sm:$0xf]
        %v1056 = vld [vmem:[%s1046 + $0x24] sm:$0xf]
        %v1057 = vld [vmem:[%s1046 + $0x28] sm:$0xf]
        %v1058 = vld [vmem:[%s1046 + $0x2c] sm:$0xf]
        %v1059 = vld [vmem:[%s1046 + $0x30] sm:$0xf]
        %v1060 = vld [vmem:[%s1046 + $0x34] sm:$0xf]
        %v1061 = vld [vmem:[%s1046 + $0x38] sm:$0xf]
        %v1062 = vld [vmem:[%s1046 + $0x3c] sm:$0xf]
        %v1081 = vunpack.c.l.b16 %v1047
        %v1082 = vunpack.c.l.b16 %v1048
        %v1083 = vunpack.c.l.b16 %v1049
        %v1084 = vunpack.c.l.b16 %v1050
        %v1085 = vunpack.c.l.b16 %v1051
        %v1086 = vunpack.c.l.b16 %v1052
        %v1087 = vunpack.c.l.b16 %v1053
        %v1088 = vunpack.c.l.b16 %v1054
        %v1089 = vunpack.c.l.b16 %v1055
        %v1090 = vunpack.c.l.b16 %v1056
        %v1091 = vunpack.c.l.b16 %v1057
        %v1092 = vunpack.c.l.b16 %v1058
        %v1093 = vunpack.c.l.b16 %v1059
        %v1094 = vunpack.c.l.b16 %v1060
        %v1095 = vunpack.c.l.b16 %v1061
        %v1096 = vunpack.c.l.b16 %v1062
        %v1097 = vpack.c.b16 %v1082, %v1081
        %v1098 = vpack.c.b16 %v1084, %v1083
        %v1099 = vpack.c.b16 %v1086, %v1085
        %v1100 = vpack.c.b16 %v1088, %v1087
        %v1101 = vpack.c.b16 %v1090, %v1089
        %v1102 = vpack.c.b16 %v1092, %v1091
        %v1103 = vpack.c.b16 %v1094, %v1093
        %v1104 = vpack.c.b16 %v1096, %v1095
        %1113 = vmatprep.subr.bf16.mxu0 0
        %1114 = vmatpush1.bf16.msra.mxu0 %v1097
        %1115 = vmatprep.subr.bf16.mxu0 0
        %1116 = vmatpush1.bf16.msra.mxu0 %v1098
        %1117 = vmatprep.subr.bf16.mxu0 0
        %1118 = vmatpush1.bf16.msra.mxu0 %v1099
        %1119 = vmatprep.subr.bf16.mxu0 0
        %1120 = vmatpush1.bf16.msra.mxu0 %v1100
        %1121 = vmatprep.subr.bf16.mxu0 0
        %1122 = vmatpush1.bf16.msra.mxu0 %v1101
        %1123 = vmatprep.subr.bf16.mxu0 0
        %1124 = vmatpush1.bf16.msra.mxu0 %v1102
        %1125 = vmatprep.subr.bf16.mxu0 0
        %1126 = vmatpush1.bf16.msra.mxu0 %v1103
        %1127 = vmatprep.subr.bf16.mxu0 0
        %1128 = vmatpush1.bf16.msra.mxu0 %v1104
        %1129 = vmatprep.subr.bf16.mxu0 0
        %1130 = vmatpush1.bf16.msra.mxu0 0
        %1131 = vmatprep.subr.bf16.mxu0 0
        %1132 = vmatpush1.bf16.msra.mxu0 0
        %1133 = vmatprep.subr.bf16.mxu0 0
        %1134 = vmatpush1.bf16.msra.mxu0 0
        %1135 = vmatprep.subr.bf16.mxu0 0
        %1136 = vmatpush1.bf16.msra.mxu0 0
        %1137 = vmatprep.subr.bf16.mxu0 0
        %1138 = vmatpush1.bf16.msra.mxu0 0
        %1139 = vmatprep.subr.bf16.mxu0 0
        %1140 = vmatpush1.bf16.msra.mxu0 0
        %1141 = vmatprep.subr.bf16.mxu0 0
        %1142 = vmatpush1.bf16.msra.mxu0 0
        %1143 = vmatprep.subr.bf16.mxu0 0
        %1144 = vmatpush1.bf16.msra.mxu0 0
        %1145 = vmatprep.mubr.bf16.mxu0 0
        %1146 = vmatmul.mubr.bf16.gmra.mrb[0].mxu0 %v988
        %v1147 = vpop.f32.mrb[0].mxu0
        %v1148 = vadd.f32 0.0, %v1147
        %v1149 = vpop.f32.mrb[0].mxu0
        %v1150 = vpop.f32.mrb[0].mxu0
        %v1151 = vadd.f32 0.0, %v1150
        %v1152 = vpop.f32.mrb[0].mxu0
        %1153 = vmatprep.mubr.bf16.mxu0 0
        %1154 = vmatmul.mubr.bf16.gmra.mrb[0].mxu0 %v989
        %v1155 = vpop.f32.mrb[0].mxu0
        %v1156 = vadd.f32 0.0, %v1155
        %v1157 = vpop.f32.mrb[0].mxu0
        %v1158 = vpop.f32.mrb[0].mxu0
        %v1159 = vadd.f32 0.0, %v1158
        %v1160 = vpop.f32.mrb[0].mxu0
        %1161 = vdwg.mxu0
        %v1178 = vunpack.c.l.b16 %v1030
        %v1179 = vunpack.c.l.b16 %v1031
        %v1180 = vunpack.c.l.b16 %v1032
        %v1181 = vunpack.c.l.b16 %v1033
        %v1182 = vunpack.c.l.b16 %v1034
        %v1183 = vunpack.c.l.b16 %v1035
        %v1184 = vunpack.c.l.b16 %v1036
        %v1185 = vunpack.c.l.b16 %v1037
        %v1186 = vunpack.c.l.b16 %v1038
        %v1187 = vunpack.c.l.b16 %v1039
        %v1188 = vunpack.c.l.b16 %v1040
        %v1189 = vunpack.c.l.b16 %v1041
        %v1190 = vunpack.c.l.b16 %v1042
        %v1191 = vunpack.c.l.b16 %v1043
        %v1192 = vunpack.c.l.b16 %v1044
        %v1193 = vunpack.c.l.b16 %v1045
        %v1194 = vpack.c.b16 %v1179, %v1178
        %v1195 = vpack.c.b16 %v1181, %v1180
        %v1196 = vpack.c.b16 %v1183, %v1182
        %v1197 = vpack.c.b16 %v1185, %v1184
        %v1198 = vpack.c.b16 %v1187, %v1186
        %v1199 = vpack.c.b16 %v1189, %v1188
        %v1200 = vpack.c.b16 %v1191, %v1190
        %v1201 = vpack.c.b16 %v1193, %v1192
        %1210 = vmatprep.subr.bf16.mxu0 0
        %1211 = vmatpush1.bf16.msra.mxu0 %v1194
        %1212 = vmatprep.subr.bf16.mxu0 0
        %1213 = vmatpush1.bf16.msra.mxu0 %v1195
        %1214 = vmatprep.subr.bf16.mxu0 0
        %1215 = vmatpush1.bf16.msra.mxu0 %v1196
        %1216 = vmatprep.subr.bf16.mxu0 0
        %1217 = vmatpush1.bf16.msra.mxu0 %v1197
        %1218 = vmatprep.subr.bf16.mxu0 0
        %1219 = vmatpush1.bf16.msra.mxu0 %v1198
        %1220 = vmatprep.subr.bf16.mxu0 0
        %1221 = vmatpush1.bf16.msra.mxu0 %v1199
        %1222 = vmatprep.subr.bf16.mxu0 0
        %1223 = vmatpush1.bf16.msra.mxu0 %v1200
        %1224 = vmatprep.subr.bf16.mxu0 0
        %1225 = vmatpush1.bf16.msra.mxu0 %v1201
        %1226 = vmatprep.subr.bf16.mxu0 0
        %1227 = vmatpush1.bf16.msra.mxu0 0
        %1228 = vmatprep.subr.bf16.mxu0 0
        %1229 = vmatpush1.bf16.msra.mxu0 0
        %1230 = vmatprep.subr.bf16.mxu0 0
        %1231 = vmatpush1.bf16.msra.mxu0 0
        %1232 = vmatprep.subr.bf16.mxu0 0
        %1233 = vmatpush1.bf16.msra.mxu0 0
        %1234 = vmatprep.subr.bf16.mxu0 0
        %1235 = vmatpush1.bf16.msra.mxu0 0
        %1236 = vmatprep.subr.bf16.mxu0 0
        %1237 = vmatpush1.bf16.msra.mxu0 0
        %1238 = vmatprep.subr.bf16.mxu0 0
        %1239 = vmatpush1.bf16.msra.mxu0 0
        %1240 = vmatprep.subr.bf16.mxu0 0
        %1241 = vmatpush1.bf16.msra.mxu0 0
        %1242 = vmatprep.mubr.bf16.mxu0 0
        %1243 = vmatmul.mubr.bf16.gmra.mrb[0].mxu0 %v1028
        %v1244 = vpop.f32.mrb[0].mxu0
        %v1245 = vadd.f32 %v1148, %v1244
        %v1246 = vpop.f32.mrb[0].mxu0
        %v1247 = vpop.f32.mrb[0].mxu0
        %v1248 = vadd.f32 %v1151, %v1247
        %v1249 = vpop.f32.mrb[0].mxu0
        %1250 = vmatprep.mubr.bf16.mxu0 0
        %1251 = vmatmul.mubr.bf16.gmra.mrb[0].mxu0 %v1029
        %v1252 = vpop.f32.mrb[0].mxu0
        %v1253 = vadd.f32 %v1156, %v1252
        %v1254 = vpop.f32.mrb[0].mxu0
        %v1255 = vpop.f32.mrb[0].mxu0
        %v1256 = vadd.f32 %v1159, %v1255
        %v1257 = vpop.f32.mrb[0].mxu0
        %1258 = vdwg.mxu0
        %vm1259 = vsmask.f32 7424
        %v1260 = vrot.slane %v994, 1
        %v1261 = vor.u32 %v991, %v1260
        %v1262 = vrot.slane %v1001, 1
        %v1263 = vsel %vm1259, %v1261, %v1262
        %v1264 = vor.u32 %v998, %v1262
        %vm1267 = vcmask 1047552
        %vm1268 = vmand %vm1267, %vm1259
        %v1269 = vsel %vm1268, %v1264, 0
        %vm1270 = vcmp.lt.s32.totalorder %v976, 15
        %vm1271 = vcmp.lt.s32.totalorder %v977, 15
        %vm1272 = vcmp.lt.s32.totalorder %v978, 15
        %vm1273 = vcmp.lt.s32.totalorder %v979, 15
        %vm1274 = vmpackc.low %vm1270, %vm1270
        %vm1275 = vmpackc.low %vm1271, %vm1271
        %vm1276 = vmpackc.low %vm1272, %vm1272
        %vm1277 = vmpackc.low %vm1273, %vm1273
        %v1278 = vsel %vm1274, 65537, 0
        %v1279 = vsel %vm1275, 65537, 0
        %v1280 = vsel %vm1276, 65537, 0
        %v1281 = vsel %vm1277, 65537, 0
        %v1282 = vunpack.c.l.b16 %v1278
        %v1283 = vunpack.c.l.b16 %v1279
        %v1284 = vunpack.c.l.b16 %v1280
        %v1285 = vunpack.c.l.b16 %v1281
        %v1286 = vpack.c.b16 %v1283, %v1282
        %v1287 = vpack.c.b16 %v1285, %v1284
        %vm1288 = vcmp.ne.s16.totalorder %v1286, 0
        %vm1289 = vcmp.ne.s16.totalorder %v1287, 0
        %v1290 = vsel %vm1288, %v1263, 0
        %v1291 = vsel %vm1289, %v1269, 0
        %s1292 = scalar_lea.vmem [#allocation5], 128
        %v1293 = vld [vmem:[%s1292] sm:$0xf]
        %v1294 = vld [vmem:[%s1292 + $0x4] sm:$0xf]
        %v1295 = vld [vmem:[%s1292 + $0x8] sm:$0xf]
        %v1296 = vld [vmem:[%s1292 + $0xc] sm:$0xf]
        %v1297 = vld [vmem:[%s1292 + $0x10] sm:$0xf]
        %v1298 = vld [vmem:[%s1292 + $0x14] sm:$0xf]
        %v1299 = vld [vmem:[%s1292 + $0x18] sm:$0xf]
        %v1300 = vld [vmem:[%s1292 + $0x1c] sm:$0xf]
        %v1301 = vld [vmem:[%s1292 + $0x20] sm:$0xf]
        %v1302 = vld [vmem:[%s1292 + $0x24] sm:$0xf]
        %v1303 = vld [vmem:[%s1292 + $0x28] sm:$0xf]
        %v1304 = vld [vmem:[%s1292 + $0x2c] sm:$0xf]
        %v1305 = vld [vmem:[%s1292 + $0x30] sm:$0xf]
        %v1306 = vld [vmem:[%s1292 + $0x34] sm:$0xf]
        %v1307 = vld [vmem:[%s1292 + $0x38] sm:$0xf]
        %v1308 = vld [vmem:[%s1292 + $0x3c] sm:$0xf]
        %v1325 = vunpack.c.l.b16 %v1293
        %v1326 = vunpack.c.l.b16 %v1294
        %v1327 = vunpack.c.l.b16 %v1295
        %v1328 = vunpack.c.l.b16 %v1296
        %v1329 = vunpack.c.l.b16 %v1297
        %v1330 = vunpack.c.l.b16 %v1298
        %v1331 = vunpack.c.l.b16 %v1299
        %v1332 = vunpack.c.l.b16 %v1300
        %v1333 = vunpack.c.l.b16 %v1301
        %v1334 = vunpack.c.l.b16 %v1302
        %v1335 = vunpack.c.l.b16 %v1303
        %v1336 = vunpack.c.l.b16 %v1304
        %v1337 = vunpack.c.l.b16 %v1305
        %v1338 = vunpack.c.l.b16 %v1306
        %v1339 = vunpack.c.l.b16 %v1307
        %v1340 = vunpack.c.l.b16 %v1308
        %v1341 = vpack.c.b16 %v1326, %v1325
        %v1342 = vpack.c.b16 %v1328, %v1327
        %v1343 = vpack.c.b16 %v1330, %v1329
        %v1344 = vpack.c.b16 %v1332, %v1331
        %v1345 = vpack.c.b16 %v1334, %v1333
        %v1346 = vpack.c.b16 %v1336, %v1335
        %v1347 = vpack.c.b16 %v1338, %v1337
        %v1348 = vpack.c.b16 %v1340, %v1339
        %1357 = vmatprep.subr.bf16.mxu0 0
        %1358 = vmatpush1.bf16.msra.mxu0 %v1341
        %1359 = vmatprep.subr.bf16.mxu0 0
        %1360 = vmatpush1.bf16.msra.mxu0 %v1342
        %1361 = vmatprep.subr.bf16.mxu0 0
        %1362 = vmatpush1.bf16.msra.mxu0 %v1343
        %1363 = vmatprep.subr.bf16.mxu0 0
        %1364 = vmatpush1.bf16.msra.mxu0 %v1344
        %1365 = vmatprep.subr.bf16.mxu0 0
        %1366 = vmatpush1.bf16.msra.mxu0 %v1345
        %1367 = vmatprep.subr.bf16.mxu0 0
        %1368 = vmatpush1.bf16.msra.mxu0 %v1346
        %1369 = vmatprep.subr.bf16.mxu0 0
        %1370 = vmatpush1.bf16.msra.mxu0 %v1347
        %1371 = vmatprep.subr.bf16.mxu0 0
        %1372 = vmatpush1.bf16.msra.mxu0 %v1348
        %1373 = vmatprep.subr.bf16.mxu0 0
        %1374 = vmatpush1.bf16.msra.mxu0 0
        %1375 = vmatprep.subr.bf16.mxu0 0
        %1376 = vmatpush1.bf16.msra.mxu0 0
        %1377 = vmatprep.subr.bf16.mxu0 0
        %1378 = vmatpush1.bf16.msra.mxu0 0
        %1379 = vmatprep.subr.bf16.mxu0 0
        %1380 = vmatpush1.bf16.msra.mxu0 0
        %1381 = vmatprep.subr.bf16.mxu0 0
        %1382 = vmatpush1.bf16.msra.mxu0 0
        %1383 = vmatprep.subr.bf16.mxu0 0
        %1384 = vmatpush1.bf16.msra.mxu0 0
        %1385 = vmatprep.subr.bf16.mxu0 0
        %1386 = vmatpush1.bf16.msra.mxu0 0
        %1387 = vmatprep.subr.bf16.mxu0 0
        %1388 = vmatpush1.bf16.msra.mxu0 0
        %1389 = vmatprep.mubr.bf16.mxu0 0
        %1390 = vmatmul.mubr.bf16.gmra.mrb[0].mxu0 %v1290
        %v1391 = vpop.f32.mrb[0].mxu0
        %v1392 = vadd.f32 0.0, %v1391
        %v1393 = vpop.f32.mrb[0].mxu0
        %v1394 = vpop.f32.mrb[0].mxu0
        %v1395 = vadd.f32 0.0, %v1394
        %v1396 = vpop.f32.mrb[0].mxu0
        %1397 = vmatprep.mubr.bf16.mxu0 0
        %1398 = vmatmul.mubr.bf16.gmra.mrb[0].mxu0 %v1291
        %v1399 = vpop.f32.mrb[0].mxu0
        %v1400 = vadd.f32 0.0, %v1399
        %v1401 = vpop.f32.mrb[0].mxu0
        %v1402 = vpop.f32.mrb[0].mxu0
        %v1403 = vadd.f32 0.0, %v1402
        %v1404 = vpop.f32.mrb[0].mxu0
        %1405 = vdwg.mxu0
        %v1406 = vadd.f32 %v1245, %v1392
        %v1407 = vadd.f32 %v1248, %v1395
        %v1408 = vadd.f32 %v1253, %v1400
        %v1409 = vadd.f32 %v1256, %v1403
        %v1410 = vld [vmem:[%s4] sm:$0x1]
        %v1412 = vlaneseq
        %v1413 = vshrl.u32 %v1412, 7
        %v1414 = vsub.s32 0, %v1413
        %v1415 = vrot.slane %v1410, %v1414
        %v1417 = vadd.f32 %v1406, %v1415
        %v1418 = vadd.f32 %v1407, %v1415
        %v1419 = vadd.f32 %v1408, %v1415
        %v1420 = vadd.f32 %v1409, %v1415
        %v1421 = vadd.f32 %v385, %v911
        %v1422 = vadd.f32 %v386, %v916
        %v1423 = vadd.f32 %v387, %v921
        %v1424 = vadd.f32 %v388, %v926
        %v1425 = vxor.u32 %v1421, 2147483648
        %v1426 = vxor.u32 %v1422, 2147483648
        %v1427 = vxor.u32 %v1423, 2147483648
        %v1428 = vxor.u32 %v1424, 2147483648
        %v1429 = vmul.f32 %v1425, 1.442695
        %v1430 = vpow.pop %v1429
        %v1431 = vmul.f32 %v1426, 1.442695
        %v1432 = vpow.pop %v1431
        %v1433 = vmul.f32 %v1427, 1.442695
        %v1434 = vpow.pop %v1433
        %v1435 = vmul.f32 %v1428, 1.442695
        %v1436 = vpow.pop %v1435
        %v1437 = vadd.f32 %v1430, 1.0
        %v1438 = vadd.f32 %v1432, 1.0
        %v1439 = vadd.f32 %v1434, 1.0
        %v1440 = vadd.f32 %v1436, 1.0
        %v1441 = vrcp.pop %v1437
        %v1442 = vmul.f32 1.0, %v1441
        %v1443 = vrcp.pop %v1438
        %v1444 = vmul.f32 1.0, %v1443
        %v1445 = vrcp.pop %v1439
        %v1446 = vmul.f32 1.0, %v1445
        %v1447 = vrcp.pop %v1440
        %v1448 = vmul.f32 1.0, %v1447
        %v1449 = vmul.f32 %v1417, %v1442
        %v1450 = vmul.f32 %v1418, %v1444
        %v1451 = vmul.f32 %v1419, %v1446
        %v1452 = vmul.f32 %v1420, %v1448
        %v1453 = vpack.c.bf16 %v1450, %v1449
        %v1454 = vpack.c.bf16 %v1452, %v1451
        %v1456 = vshrl.u32 %v1453, 16
        %v1458 = vrot.slane %v1456, 7
        %v1459 = vshll.u32 %v1453, 16
        %v1461 = vor.u32 %v1458, %v1459
        %v1463 = vshrl.u32 %v1454, 16
        %v1465 = vrot.slane %v1463, 7
        %v1466 = vshll.u32 %v1454, 16
        %v1468 = vor.u32 %v1465, %v1466
        %v1469 = vsel %vm488, %v1458, %v1468
        %v1472 = vsel %vm489, 0, %v1461
        %v1473 = vsel %vm1026, %v1472, 0
        %v1474 = vsel %vm1027, %v1469, 0
        %v1475 = vld [vmem:[#allocation7] sm:$0xf]
        %v1476 = vld [vmem:[#allocation7 + $0x4] sm:$0xf]
        %v1477 = vld [vmem:[#allocation7 + $0x8] sm:$0xf]
        %v1478 = vld [vmem:[#allocation7 + $0xc] sm:$0xf]
        %v1479 = vld [vmem:[#allocation7 + $0x10] sm:$0xf]
        %v1480 = vld [vmem:[#allocation7 + $0x14] sm:$0xf]
        %v1481 = vld [vmem:[#allocation7 + $0x18] sm:$0xf]
        %v1482 = vld [vmem:[#allocation7 + $0x1c] sm:$0xf]
        %v1483 = vld [vmem:[#allocation7 + $0x20] sm:$0xf]
        %v1484 = vld [vmem:[#allocation7 + $0x24] sm:$0xf]
        %v1485 = vld [vmem:[#allocation7 + $0x28] sm:$0xf]
        %v1486 = vld [vmem:[#allocation7 + $0x2c] sm:$0xf]
        %v1487 = vld [vmem:[#allocation7 + $0x30] sm:$0xf]
        %v1488 = vld [vmem:[#allocation7 + $0x34] sm:$0xf]
        %v1489 = vld [vmem:[#allocation7 + $0x38] sm:$0xf]
        %v1490 = vld [vmem:[#allocation7 + $0x3c] sm:$0xf]
        %s1491 = scalar_lea.vmem [#allocation7], 64
        %v1492 = vld [vmem:[%s1491] sm:$0xf]
        %v1493 = vld [vmem:[%s1491 + $0x4] sm:$0xf]
        %v1494 = vld [vmem:[%s1491 + $0x8] sm:$0xf]
        %v1495 = vld [vmem:[%s1491 + $0xc] sm:$0xf]
        %v1496 = vld [vmem:[%s1491 + $0x10] sm:$0xf]
        %v1497 = vld [vmem:[%s1491 + $0x14] sm:$0xf]
        %v1498 = vld [vmem:[%s1491 + $0x18] sm:$0xf]
        %v1499 = vld [vmem:[%s1491 + $0x1c] sm:$0xf]
        %v1500 = vld [vmem:[%s1491 + $0x20] sm:$0xf]
        %v1501 = vld [vmem:[%s1491 + $0x24] sm:$0xf]
        %v1502 = vld [vmem:[%s1491 + $0x28] sm:$0xf]
        %v1503 = vld [vmem:[%s1491 + $0x2c] sm:$0xf]
        %v1504 = vld [vmem:[%s1491 + $0x30] sm:$0xf]
        %v1505 = vld [vmem:[%s1491 + $0x34] sm:$0xf]
        %v1506 = vld [vmem:[%s1491 + $0x38] sm:$0xf]
        %v1507 = vld [vmem:[%s1491 + $0x3c] sm:$0xf]
        %v1524 = vunpack.c.l.b16 %v1492
        %v1525 = vunpack.c.l.b16 %v1493
        %v1526 = vunpack.c.l.b16 %v1494
        %v1527 = vunpack.c.l.b16 %v1495
        %v1528 = vunpack.c.l.b16 %v1496
        %v1529 = vunpack.c.l.b16 %v1497
        %v1530 = vunpack.c.l.b16 %v1498
        %v1531 = vunpack.c.l.b16 %v1499
        %v1532 = vunpack.c.l.b16 %v1500
        %v1533 = vunpack.c.l.b16 %v1501
        %v1534 = vunpack.c.l.b16 %v1502
        %v1535 = vunpack.c.l.b16 %v1503
        %v1536 = vunpack.c.l.b16 %v1504
        %v1537 = vunpack.c.l.b16 %v1505
        %v1538 = vunpack.c.l.b16 %v1506
        %v1539 = vunpack.c.l.b16 %v1507
        %v1540 = vpack.c.b16 %v1525, %v1524
        %v1541 = vpack.c.b16 %v1527, %v1526
        %v1542 = vpack.c.b16 %v1529, %v1528
        %v1543 = vpack.c.b16 %v1531, %v1530
        %v1544 = vpack.c.b16 %v1533, %v1532
        %v1545 = vpack.c.b16 %v1535, %v1534
        %v1546 = vpack.c.b16 %v1537, %v1536
        %v1547 = vpack.c.b16 %v1539, %v1538
        %1556 = vmatprep.subr.bf16.mxu0 0
        %1557 = vmatpush1.bf16.msra.mxu0 %v1540
        %1558 = vmatprep.subr.bf16.mxu0 0
        %1559 = vmatpush1.bf16.msra.mxu0 %v1541
        %1560 = vmatprep.subr.bf16.mxu0 0
        %1561 = vmatpush1.bf16.msra.mxu0 %v1542
        %1562 = vmatprep.subr.bf16.mxu0 0
        %1563 = vmatpush1.bf16.msra.mxu0 %v1543
        %1564 = vmatprep.subr.bf16.mxu0 0
        %1565 = vmatpush1.bf16.msra.mxu0 %v1544
        %1566 = vmatprep.subr.bf16.mxu0 0
        %1567 = vmatpush1.bf16.msra.mxu0 %v1545
        %1568 = vmatprep.subr.bf16.mxu0 0
        %1569 = vmatpush1.bf16.msra.mxu0 %v1546
        %1570 = vmatprep.subr.bf16.mxu0 0
        %1571 = vmatpush1.bf16.msra.mxu0 %v1547
        %1572 = vmatprep.subr.bf16.mxu0 0
        %1573 = vmatpush1.bf16.msra.mxu0 0
        %1574 = vmatprep.subr.bf16.mxu0 0
        %1575 = vmatpush1.bf16.msra.mxu0 0
        %1576 = vmatprep.subr.bf16.mxu0 0
        %1577 = vmatpush1.bf16.msra.mxu0 0
        %1578 = vmatprep.subr.bf16.mxu0 0
        %1579 = vmatpush1.bf16.msra.mxu0 0
        %1580 = vmatprep.subr.bf16.mxu0 0
        %1581 = vmatpush1.bf16.msra.mxu0 0
        %1582 = vmatprep.subr.bf16.mxu0 0
        %1583 = vmatpush1.bf16.msra.mxu0 0
        %1584 = vmatprep.subr.bf16.mxu0 0
        %1585 = vmatpush1.bf16.msra.mxu0 0
        %1586 = vmatprep.subr.bf16.mxu0 0
        %1587 = vmatpush1.bf16.msra.mxu0 0
        %1588 = vmatprep.mubr.bf16.mxu0 0
        %1589 = vmatmul.mubr.bf16.gmra.mrb[0].mxu0 %v1453
        %v1590 = vpop.f32.mrb[0].mxu0
        %v1591 = vadd.f32 0.0, %v1590
        %v1592 = vpop.f32.mrb[0].mxu0
        %v1593 = vpop.f32.mrb[0].mxu0
        %v1594 = vadd.f32 0.0, %v1593
        %v1595 = vpop.f32.mrb[0].mxu0
        %1596 = vmatprep.mubr.bf16.mxu0 0
        %1597 = vmatmul.mubr.bf16.gmra.mrb[0].mxu0 %v1454
        %v1598 = vpop.f32.mrb[0].mxu0
        %v1599 = vadd.f32 0.0, %v1598
        %v1600 = vpop.f32.mrb[0].mxu0
        %v1601 = vpop.f32.mrb[0].mxu0
        %v1602 = vadd.f32 0.0, %v1601
        %v1603 = vpop.f32.mrb[0].mxu0
        %1604 = vdwg.mxu0
        %v1621 = vunpack.c.l.b16 %v1475
        %v1622 = vunpack.c.l.b16 %v1476
        %v1623 = vunpack.c.l.b16 %v1477
        %v1624 = vunpack.c.l.b16 %v1478
        %v1625 = vunpack.c.l.b16 %v1479
        %v1626 = vunpack.c.l.b16 %v1480
        %v1627 = vunpack.c.l.b16 %v1481
        %v1628 = vunpack.c.l.b16 %v1482
        %v1629 = vunpack.c.l.b16 %v1483
        %v1630 = vunpack.c.l.b16 %v1484
        %v1631 = vunpack.c.l.b16 %v1485
        %v1632 = vunpack.c.l.b16 %v1486
        %v1633 = vunpack.c.l.b16 %v1487
        %v1634 = vunpack.c.l.b16 %v1488
        %v1635 = vunpack.c.l.b16 %v1489
        %v1636 = vunpack.c.l.b16 %v1490
        %v1637 = vpack.c.b16 %v1622, %v1621
        %v1638 = vpack.c.b16 %v1624, %v1623
        %v1639 = vpack.c.b16 %v1626, %v1625
        %v1640 = vpack.c.b16 %v1628, %v1627
        %v1641 = vpack.c.b16 %v1630, %v1629
        %v1642 = vpack.c.b16 %v1632, %v1631
        %v1643 = vpack.c.b16 %v1634, %v1633
        %v1644 = vpack.c.b16 %v1636, %v1635
        %1653 = vmatprep.subr.bf16.mxu0 0
        %1654 = vmatpush1.bf16.msra.mxu0 %v1637
        %1655 = vmatprep.subr.bf16.mxu0 0
        %1656 = vmatpush1.bf16.msra.mxu0 %v1638
        %1657 = vmatprep.subr.bf16.mxu0 0
        %1658 = vmatpush1.bf16.msra.mxu0 %v1639
        %1659 = vmatprep.subr.bf16.mxu0 0
        %1660 = vmatpush1.bf16.msra.mxu0 %v1640
        %1661 = vmatprep.subr.bf16.mxu0 0
        %1662 = vmatpush1.bf16.msra.mxu0 %v1641
        %1663 = vmatprep.subr.bf16.mxu0 0
        %1664 = vmatpush1.bf16.msra.mxu0 %v1642
        %1665 = vmatprep.subr.bf16.mxu0 0
        %1666 = vmatpush1.bf16.msra.mxu0 %v1643
        %1667 = vmatprep.subr.bf16.mxu0 0
        %1668 = vmatpush1.bf16.msra.mxu0 %v1644
        %1669 = vmatprep.subr.bf16.mxu0 0
        %1670 = vmatpush1.bf16.msra.mxu0 0
        %1671 = vmatprep.subr.bf16.mxu0 0
        %1672 = vmatpush1.bf16.msra.mxu0 0
        %1673 = vmatprep.subr.bf16.mxu0 0
        %1674 = vmatpush1.bf16.msra.mxu0 0
        %1675 = vmatprep.subr.bf16.mxu0 0
        %1676 = vmatpush1.bf16.msra.mxu0 0
        %1677 = vmatprep.subr.bf16.mxu0 0
        %1678 = vmatpush1.bf16.msra.mxu0 0
        %1679 = vmatprep.subr.bf16.mxu0 0
        %1680 = vmatpush1.bf16.msra.mxu0 0
        %1681 = vmatprep.subr.bf16.mxu0 0
        %1682 = vmatpush1.bf16.msra.mxu0 0
        %1683 = vmatprep.subr.bf16.mxu0 0
        %1684 = vmatpush1.bf16.msra.mxu0 0
        %1685 = vmatprep.mubr.bf16.mxu0 0
        %1686 = vmatmul.mubr.bf16.gmra.mrb[0].mxu0 %v1473
        %v1687 = vpop.f32.mrb[0].mxu0
        %v1688 = vadd.f32 %v1591, %v1687
        %v1689 = vpop.f32.mrb[0].mxu0
        %v1690 = vpop.f32.mrb[0].mxu0
        %v1691 = vadd.f32 %v1594, %v1690
        %v1692 = vpop.f32.mrb[0].mxu0
        %1693 = vmatprep.mubr.bf16.mxu0 0
        %1694 = vmatmul.mubr.bf16.gmra.mrb[0].mxu0 %v1474
        %v1695 = vpop.f32.mrb[0].mxu0
        %v1696 = vadd.f32 %v1599, %v1695
        %v1697 = vpop.f32.mrb[0].mxu0
        %v1698 = vpop.f32.mrb[0].mxu0
        %v1699 = vadd.f32 %v1602, %v1698
        %v1700 = vpop.f32.mrb[0].mxu0
        %1701 = vdwg.mxu0
        %v1702 = vrot.slane %v1459, 1
        %v1703 = vor.u32 %v1456, %v1702
        %v1704 = vrot.slane %v1466, 1
        %v1705 = vsel %vm1259, %v1703, %v1704
        %v1706 = vor.u32 %v1463, %v1704
        %v1709 = vsel %vm1268, %v1706, 0
        %v1710 = vsel %vm1288, %v1705, 0
        %v1711 = vsel %vm1289, %v1709, 0
        %s1712 = scalar_lea.vmem [#allocation7], 128
        %v1713 = vld [vmem:[%s1712] sm:$0xf]
        %v1714 = vld [vmem:[%s1712 + $0x4] sm:$0xf]
        %v1715 = vld [vmem:[%s1712 + $0x8] sm:$0xf]
        %v1716 = vld [vmem:[%s1712 + $0xc] sm:$0xf]
        %v1717 = vld [vmem:[%s1712 + $0x10] sm:$0xf]
        %v1718 = vld [vmem:[%s1712 + $0x14] sm:$0xf]
        %v1719 = vld [vmem:[%s1712 + $0x18] sm:$0xf]
        %v1720 = vld [vmem:[%s1712 + $0x1c] sm:$0xf]
        %v1721 = vld [vmem:[%s1712 + $0x20] sm:$0xf]
        %v1722 = vld [vmem:[%s1712 + $0x24] sm:$0xf]
        %v1723 = vld [vmem:[%s1712 + $0x28] sm:$0xf]
        %v1724 = vld [vmem:[%s1712 + $0x2c] sm:$0xf]
        %v1725 = vld [vmem:[%s1712 + $0x30] sm:$0xf]
        %v1726 = vld [vmem:[%s1712 + $0x34] sm:$0xf]
        %v1727 = vld [vmem:[%s1712 + $0x38] sm:$0xf]
        %v1728 = vld [vmem:[%s1712 + $0x3c] sm:$0xf]
        %v1745 = vunpack.c.l.b16 %v1713
        %v1746 = vunpack.c.l.b16 %v1714
        %v1747 = vunpack.c.l.b16 %v1715
        %v1748 = vunpack.c.l.b16 %v1716
        %v1749 = vunpack.c.l.b16 %v1717
        %v1750 = vunpack.c.l.b16 %v1718
        %v1751 = vunpack.c.l.b16 %v1719
        %v1752 = vunpack.c.l.b16 %v1720
        %v1753 = vunpack.c.l.b16 %v1721
        %v1754 = vunpack.c.l.b16 %v1722
        %v1755 = vunpack.c.l.b16 %v1723
        %v1756 = vunpack.c.l.b16 %v1724
        %v1757 = vunpack.c.l.b16 %v1725
        %v1758 = vunpack.c.l.b16 %v1726
        %v1759 = vunpack.c.l.b16 %v1727
        %v1760 = vunpack.c.l.b16 %v1728
        %v1761 = vpack.c.b16 %v1746, %v1745
        %v1762 = vpack.c.b16 %v1748, %v1747
        %v1763 = vpack.c.b16 %v1750, %v1749
        %v1764 = vpack.c.b16 %v1752, %v1751
        %v1765 = vpack.c.b16 %v1754, %v1753
        %v1766 = vpack.c.b16 %v1756, %v1755
        %v1767 = vpack.c.b16 %v1758, %v1757
        %v1768 = vpack.c.b16 %v1760, %v1759
        %1777 = vmatprep.subr.bf16.mxu0 0
        %1778 = vmatpush1.bf16.msra.mxu0 %v1761
        %1779 = vmatprep.subr.bf16.mxu0 0
        %1780 = vmatpush1.bf16.msra.mxu0 %v1762
        %1781 = vmatprep.subr.bf16.mxu0 0
        %1782 = vmatpush1.bf16.msra.mxu0 %v1763
        %1783 = vmatprep.subr.bf16.mxu0 0
        %1784 = vmatpush1.bf16.msra.mxu0 %v1764
        %1785 = vmatprep.subr.bf16.mxu0 0
        %1786 = vmatpush1.bf16.msra.mxu0 %v1765
        %1787 = vmatprep.subr.bf16.mxu0 0
        %1788 = vmatpush1.bf16.msra.mxu0 %v1766
        %1789 = vmatprep.subr.bf16.mxu0 0
        %1790 = vmatpush1.bf16.msra.mxu0 %v1767
        %1791 = vmatprep.subr.bf16.mxu0 0
        %1792 = vmatpush1.bf16.msra.mxu0 %v1768
        %1793 = vmatprep.subr.bf16.mxu0 0
        %1794 = vmatpush1.bf16.msra.mxu0 0
        %1795 = vmatprep.subr.bf16.mxu0 0
        %1796 = vmatpush1.bf16.msra.mxu0 0
        %1797 = vmatprep.subr.bf16.mxu0 0
        %1798 = vmatpush1.bf16.msra.mxu0 0
        %1799 = vmatprep.subr.bf16.mxu0 0
        %1800 = vmatpush1.bf16.msra.mxu0 0
        %1801 = vmatprep.subr.bf16.mxu0 0
        %1802 = vmatpush1.bf16.msra.mxu0 0
        %1803 = vmatprep.subr.bf16.mxu0 0
        %1804 = vmatpush1.bf16.msra.mxu0 0
        %1805 = vmatprep.subr.bf16.mxu0 0
        %1806 = vmatpush1.bf16.msra.mxu0 0
        %1807 = vmatprep.subr.bf16.mxu0 0
        %1808 = vmatpush1.bf16.msra.mxu0 0
        %1809 = vmatprep.mubr.bf16.mxu0 0
        %1810 = vmatmul.mubr.bf16.gmra.mrb[0].mxu0 %v1710
        %v1811 = vpop.f32.mrb[0].mxu0
        %v1812 = vadd.f32 0.0, %v1811
        %v1813 = vpop.f32.mrb[0].mxu0
        %v1814 = vpop.f32.mrb[0].mxu0
        %v1815 = vadd.f32 0.0, %v1814
        %v1816 = vpop.f32.mrb[0].mxu0
        %1817 = vmatprep.mubr.bf16.mxu0 0
        %1818 = vmatmul.mubr.bf16.gmra.mrb[0].mxu0 %v1711
        %v1819 = vpop.f32.mrb[0].mxu0
        %v1820 = vadd.f32 0.0, %v1819
        %v1821 = vpop.f32.mrb[0].mxu0
        %v1822 = vpop.f32.mrb[0].mxu0
        %v1823 = vadd.f32 0.0, %v1822
        %v1824 = vpop.f32.mrb[0].mxu0
        %1825 = vdwg.mxu0
        %v1826 = vadd.f32 %v1688, %v1812
        %v1827 = vadd.f32 %v1691, %v1815
        %v1828 = vadd.f32 %v1696, %v1820
        %v1829 = vadd.f32 %v1699, %v1823
        %v1830 = vld [vmem:[%s6] sm:$0x1]
        %v1832 = vlaneseq
        %v1833 = vshrl.u32 %v1832, 7
        %v1834 = vsub.s32 0, %v1833
        %v1835 = vrot.slane %v1830, %v1834
        %v1837 = vadd.f32 %v1826, %v1835
        %v1838 = vadd.f32 %v1827, %v1835
        %v1839 = vadd.f32 %v1828, %v1835
        %v1840 = vadd.f32 %v1829, %v1835
        %1841 = vst [vmem:[%s370] sm:$0xff] %v1837
        %1842 = vst [vmem:[%s370 + $0x8] sm:$0xff] %v1838
        %1843 = vst [vmem:[%s370 + $0x10] sm:$0xff] %v1839
        %1844 = vst [vmem:[%s370 + $0x18] sm:$0xff] %v1840
        %s1845 = sand.u32 %s227, 1
        %s1846 = scalar_lea.sflag [#allocation4], %s1845
        %s1847 = sand.u32 %s227, 1
        %s1848 = smul.addr %s1847, 32
        %s1849 = scalar_lea.vmem [#allocation8], %s1848
        // Predicated region
        $region69: #{tpu_custom_call.1} parent=55 // pred_check
          %p1850 = pneg %p237
        $region70: #{tpu_custom_call.1} parent=55 // pred_check_branch
          %1852 = sbr.rel (%p1850) target = $region72
        $region71: #{tpu_custom_call.1} parent=55 // pred_region
          %s1853 = smul.u32 4, %s25
          %s1855 = ssub.s32 512, 512
          %1856 = vsyncadd %s1846, %s1855
          %s1857 = smul.addr %s1853, 128
          %s1858 = scalar_lea.hbm %s9, %s1857
          %s1859 = sshll.u32 %s1849, 4
          %s1860 = int_to_ptr.vmem [resolvable:$true] %s1859
          %1865 = dma.vmem_to_hbm [thread:$0]  %s1860, 512, %s1858, %s1846, 128, 128, 8
        $region72: #{tpu_custom_call.1} parent=55 // pred_fallthru
          _
      $region56: #{tpu_custom_call.1} parent=5 // pred_fallthru
        _
      %p1866 = scmp.le.s32.totalorder 2, %s20
      // Predicated region
      $region73: #{tpu_custom_call.1} parent=5 // pred_check
        %p1867 = pneg %p1866
      $region74: #{tpu_custom_call.1} parent=5 // pred_check_branch
        %1869 = sbr.rel (%p1867) target = $region76
      $region75: #{tpu_custom_call.1} parent=5 // pred_region
        %s1870 = ssub.s32 %s20, 2
        // Predicated region
        $region77: #{tpu_custom_call.1} parent=75 // pred_check
          %p1871 = pneg %p243
        $region78: #{tpu_custom_call.1} parent=75 // pred_check_branch
          %1873 = sbr.rel (%p1871) target = $region80
        $region79: #{tpu_custom_call.1} parent=75 // pred_region
          %s1874 = sand.u32 %s228, 1
          %s1875 = scalar_lea.sflag [#allocation4], %s1874
          %s1876 = sand.u32 %s228, 1
          %s1877 = smul.addr %s1876, 32
          %s1878 = scalar_lea.vmem [#allocation8], %s1877
          %1879 = dma.done %s1875, 512
        $region80: #{tpu_custom_call.1} parent=75 // pred_fallthru
          _
      $region76: #{tpu_custom_call.1} parent=5 // pred_fallthru
        _
    $region6: #{tpu_custom_call.1} parent=1 // loop_footer
      %s24 = sadd.s32 1, %s20
    $region7: #{tpu_custom_call.1} parent=1 // loop_footer_branch
      %19 = sbr.rel target = $region3
    $region8: #{tpu_custom_call.1} parent=1 // loop_exit
      _
    %1880 = vsyncpa [#allocation3], 1
    %s1881 = scalar_lea.sflag [#allocation3], 1
    %1882 = vsyncpa %s1881, 1
    %1883 = vsyncpa [#allocation6], 1
    %1884 = vsyncpa [#allocation4], 1
    %s1885 = scalar_lea.sflag [#allocation4], 1
    %1886 = vsyncpa %s1885, 1

</llo_original>
